<compile_context>
chip_gen: v6e
topology: v6e:2x2x1
jax: 0.10.0
libtpu: 0.0.40
codegen_flags: <defaults>
</compile_context>

<pallas_src>
import math
from functools import partial

import jax
import jax.numpy as jnp
from jax import lax
from jax.experimental import pallas as pl
from jax.experimental.pallas import tpu as pltpu


def _conv_prelu_upsample_kernel(x_ref, w_ref, b_ref, a_ref, o_ref,
                                *, th, w, cin, cp, s):
    # x_ref : (th+2, w+2, cin)  bf16  halo row-tile of the zero-padded input
    # w_ref : (9, cin, cp)      bf16  conv taps as GEMM matrices (dy*3+dx)
    # b_ref : (1, cp)           f32   bias (zero-padded channels)
    # a_ref : (1, 1)            f32   PReLU alpha (SMEM scalar)
    # o_ref : (th, s, w, s*cp)  f32   upsample-replicated output tile
    xt = x_ref[...]                                    # whole halo tile (bf16)

    acc = jnp.zeros((th * w, cp), jnp.float32)
    for k in range(9):                                 # 9 shifted GEMMs (MXU)
        dy, dx = divmod(k, 3)
        xs = xt[dy:dy + th, dx:dx + w, :].reshape(th * w, cin)
        acc = acc + jnp.dot(xs, w_ref[k], preferred_element_type=jnp.float32)

    y = acc + b_ref[...]                               # bias
    alpha = a_ref[0, 0]                                # SMEM scalar
    y = jnp.where(y >= 0, y, alpha * y)                # PReLU

    # Fused nearest upsample (scale s): replicate along W by packing s copies
    # into the lane dim, replicate along H by broadcasting an outer dim.
    y3 = y.reshape(th, w, cp)
    yw = jnp.concatenate([y3] * s, axis=-1)            # (th, w, s*cp)
    rep = jnp.broadcast_to(yw[:, None, :, :], (th, s, w, s * cp))
    o_ref[...] = rep.astype(o_ref.dtype)


def _pick_tile_rows(H, W, Cin, CP, S,
                    budget_bytes=20 * 1024 * 1024, max_gemm_rows=8192):
    """Largest divisor of H whose double-buffered tile footprint fits the budget.

    Budget is conservative so the same tiling fits v7x (64 MiB physical /
    32 MiB default scoped), v6e and v5e (with vmem_limit_bytes raised).
    """
    def tile_bytes(th):
        inp = (th + 2) * (W + 2) * Cin * 2          # bf16 halo input tile
        out = th * S * W * S * CP * 4               # f32 replicated output tile
        acc = th * W * CP * 4                       # f32 accumulator
        return 2 * (inp + out) + acc + 9 * Cin * CP * 2 + CP * 4

    best = 1
    for th in range(1, H + 1):
        if H % th == 0 and tile_bytes(th) <= budget_bytes and th * W <= max_gemm_rows:
            best = th
    return best


def upsample_block_forward(x_nchw, weight, bias, alpha, up_scale):
    """Pallas implementation of UpsampleBLock.forward.

    x_nchw : (N, Cin, H, W) float32
    weight : (Cout, Cin, 3, 3) float32   (PyTorch OIHW conv weight)
    bias   : (Cout,) float32
    alpha  : scalar float32 (PReLU, num_parameters=1)
    """
    N, Cin, H, W = x_nchw.shape
    Cout = weight.shape[0]
    S = int(up_scale)

    # Pad channels so the packed output lane dim (S*CP) is a multiple of 128
    # (lane-dense, unmasked stores) with minimal write amplification.
    unit = 128 // math.gcd(128, S)
    CP = ((Cout + unit - 1) // unit) * unit

    TH = _pick_tile_rows(H, W, Cin, CP, S)
    nT = H // TH

    # --- glue: NCHW -> NHWC (bf16), zero-pad, halo row-tiles ----------------
    x = jnp.transpose(x_nchw, (0, 2, 3, 1)).astype(jnp.bfloat16)   # NHWC bf16
    xpad = jnp.pad(x, ((0, 0), (1, 1), (1, 1), (0, 0)))            # SAME pad
    # TODO(synk): with pl.Element halo indexing this small (TH+2)/TH window
    # duplication could be removed and blocks fetched straight from xpad.
    tiles = jnp.stack([xpad[:, i * TH:i * TH + TH + 2] for i in range(nT)],
                      axis=1)                                      # (N,nT,TH+2,W+2,Cin)

    # conv weight (Cout,Cin,kh,kw) -> (kh,kw,Cin,Cout) -> (9,Cin,CP) bf16
    wmat = jnp.transpose(weight, (2, 3, 1, 0)).reshape(9, Cin, Cout)
    wmat = jnp.pad(wmat, ((0, 0), (0, 0), (0, CP - Cout))).astype(jnp.bfloat16)
    b2 = jnp.pad(bias.astype(jnp.float32), (0, CP - Cout)).reshape(1, CP)
    a2 = jnp.asarray(alpha, jnp.float32).reshape(1, 1)

    kernel = partial(_conv_prelu_upsample_kernel,
                     th=TH, w=W, cin=Cin, cp=CP, s=S)

    out = pl.pallas_call(
        kernel,
        out_shape=jax.ShapeDtypeStruct((N, H, S, W, S * CP), jnp.float32),
        grid=(N, nT),
        in_specs=[
            pl.BlockSpec((None, None, TH + 2, W + 2, Cin),
                         lambda n, i: (n, i, 0, 0, 0)),
            pl.BlockSpec((9, Cin, CP), lambda n, i: (0, 0, 0)),
            pl.BlockSpec((1, CP), lambda n, i: (0, 0)),
            pl.BlockSpec(memory_space=pltpu.MemorySpace.SMEM),      # alpha
        ],
        out_specs=pl.BlockSpec((None, TH, S, W, S * CP),
                               lambda n, i: (n, i, 0, 0, 0)),
        compiler_params=pltpu.CompilerParams(
            dimension_semantics=("parallel", "parallel"),
            vmem_limit_bytes=48 * 1024 * 1024,
        ),
    )(tiles, wmat, b2, a2)

    # (N,H,S,W,S*CP) -> (N,H*S,W*S,CP): contiguous (free) reshape; drop padding.
    y = out.reshape(N, H * S, W * S, CP)[..., :Cout]
    # TODO(synk): callers that can consume NHWC should skip this final transpose.
    return jnp.transpose(y, (0, 3, 1, 2))                          # NCHW


def _reference_forward(x, w, b, alpha, s):
    """Pure-JAX reference mirroring the PyTorch module (f32 accumulation)."""
    y = lax.conv_general_dilated(
        x, w, window_strides=(1, 1), padding="SAME",
        dimension_numbers=("NCHW", "OIHW", "NCHW"),
        precision=lax.Precision.HIGHEST)
    y = y + b.reshape(1, -1, 1, 1)
    y = jnp.repeat(jnp.repeat(y, s, axis=2), s, axis=3)            # nearest
    return jnp.where(y >= 0, y, alpha * y)                         # PReLU


if __name__ == "__main__":
    # Small shapes consistent with the module: batch=2, channels=4, 16x16, x2.
    N, C, H, W = 2, 4, 16, 16
    up_scale = 2

    key = jax.random.PRNGKey(0)
    kx, kw, kb = jax.random.split(key, 3)
    x = jax.random.normal(kx, (N, C, H, W), dtype=jnp.float32)
    weight = 0.1 * jax.random.normal(kw, (C, C, 3, 3), dtype=jnp.float32)
    bias = 0.1 * jax.random.normal(kb, (C,), dtype=jnp.float32)
    alpha = jnp.float32(0.25)   # PyTorch PReLU default init

    out = upsample_block_forward(x, weight, bias, alpha, up_scale)
    out = jax.block_until_ready(out)

    # Reference uses the same bf16-quantized x/w with f32 accumulation,
    # matching the kernel's MXU bf16 x bf16 -> f32 math.
    xq = x.astype(jnp.bfloat16).astype(jnp.float32)
    wq = weight.astype(jnp.bfloat16).astype(jnp.float32)
    ref = _reference_forward(xq, wq, bias, alpha, up_scale)

    assert out.shape == (N, C, H * up_scale, W * up_scale), out.shape
    err = float(jnp.max(jnp.abs(out - ref)))
    assert jnp.allclose(out, ref, atol=2e-3, rtol=2e-3), f"mismatch, max err={err}"

    print("KERNEL_OK")
</pallas_src>

<mosaic_0001>
module attributes {stable_mosaic.version = 11 : i64} {
  func.func @_conv_prelu_upsample_kernel(%arg0: i32, %arg1: i32, %arg2: memref<1x1x18x18x4xbf16, #tpu.memory_space<vmem>>, %arg3: memref<9x4x64xbf16, #tpu.memory_space<vmem>>, %arg4: memref<1x64xf32, #tpu.memory_space<vmem>>, %arg5: memref<1x1xf32, #tpu.memory_space<smem>>, %arg6: memref<1x16x2x16x128xf32, #tpu.memory_space<vmem>>) attributes {dimension_semantics = [#tpu.dimension_semantics<parallel>, #tpu.dimension_semantics<parallel>], iteration_bounds = array<i64: 2, 1>, scalar_prefetch = 0 : i64, scratch_operands = 0 : i64, tpu.core_type = #tpu.core_type<tc>, window_params = [{transform_indices = @transform_0, window_bounds = array<i64: 1, 1, 18, 18, 4>}, {pipeline_mode = #tpu.pipeline_mode<synchronous>, transform_indices = @transform_1, window_bounds = array<i64: 9, 4, 64>}, {pipeline_mode = #tpu.pipeline_mode<synchronous>, transform_indices = @transform_2, window_bounds = array<i64: 1, 64>}, {transform_indices = @transform_3, window_bounds = array<i64: 1, 1>}, {transform_indices = @transform_4, window_bounds = array<i64: 1, 16, 2, 16, 128>}]} {
    %c0 = arith.constant 0 : index
    %c0_0 = arith.constant 0 : index
    %c0_1 = arith.constant 0 : index
    %c0_2 = arith.constant 0 : index
    %c0_3 = arith.constant 0 : index
    %0 = vector.load %arg2[%c0, %c0_0, %c0_1, %c0_2, %c0_3] : memref<1x1x18x18x4xbf16, #tpu.memory_space<vmem>>, vector<1x1x18x18x4xbf16>
    %1 = vector.shape_cast %0 : vector<1x1x18x18x4xbf16> to vector<18x18x4xbf16>
    %cst = arith.constant 0.000000e+00 : f32
    %2 = vector.broadcast %cst : f32 to vector<256x64xf32>
    %3 = vector.extract_strided_slice %1 {offsets = [0, 0, 0], sizes = [16, 16, 4], strides = [1, 1, 1]} : vector<18x18x4xbf16> to vector<16x16x4xbf16>
    %4 = vector.shape_cast %3 : vector<16x16x4xbf16> to vector<256x4xbf16>
    %c0_4 = arith.constant 0 : index
    %c0_5 = arith.constant 0 : index
    %c0_6 = arith.constant 0 : index
    %5 = vector.load %arg3[%c0_4, %c0_5, %c0_6] : memref<9x4x64xbf16, #tpu.memory_space<vmem>>, vector<1x4x64xbf16>
    %6 = vector.shape_cast %5 : vector<1x4x64xbf16> to vector<4x64xbf16>
    %cst_7 = arith.constant dense<0.000000e+00> : vector<256x64xf32>
    %7 = tpu.matmul %4, %6, %cst_7 {dimension_numbers = #tpu.dot_dimension_numbers<[1], [0], [0], [1], [0, 0, 1, 1], [], []>} : vector<256x4xbf16>, vector<4x64xbf16>, vector<256x64xf32> -> vector<256x64xf32>
    %8 = arith.addf %2, %7 : vector<256x64xf32>
    %9 = vector.extract_strided_slice %1 {offsets = [0, 1, 0], sizes = [16, 16, 4], strides = [1, 1, 1]} : vector<18x18x4xbf16> to vector<16x16x4xbf16>
    %10 = vector.shape_cast %9 : vector<16x16x4xbf16> to vector<256x4xbf16>
    %c1 = arith.constant 1 : index
    %c0_8 = arith.constant 0 : index
    %c0_9 = arith.constant 0 : index
    %11 = vector.load %arg3[%c1, %c0_8, %c0_9] : memref<9x4x64xbf16, #tpu.memory_space<vmem>>, vector<1x4x64xbf16>
    %12 = vector.shape_cast %11 : vector<1x4x64xbf16> to vector<4x64xbf16>
    %cst_10 = arith.constant dense<0.000000e+00> : vector<256x64xf32>
    %13 = tpu.matmul %10, %12, %cst_10 {dimension_numbers = #tpu.dot_dimension_numbers<[1], [0], [0], [1], [0, 0, 1, 1], [], []>} : vector<256x4xbf16>, vector<4x64xbf16>, vector<256x64xf32> -> vector<256x64xf32>
    %14 = arith.addf %8, %13 : vector<256x64xf32>
    %15 = vector.extract_strided_slice %1 {offsets = [0, 2, 0], sizes = [16, 16, 4], strides = [1, 1, 1]} : vector<18x18x4xbf16> to vector<16x16x4xbf16>
    %16 = vector.shape_cast %15 : vector<16x16x4xbf16> to vector<256x4xbf16>
    %c2 = arith.constant 2 : index
    %c0_11 = arith.constant 0 : index
    %c0_12 = arith.constant 0 : index
    %17 = vector.load %arg3[%c2, %c0_11, %c0_12] : memref<9x4x64xbf16, #tpu.memory_space<vmem>>, vector<1x4x64xbf16>
    %18 = vector.shape_cast %17 : vector<1x4x64xbf16> to vector<4x64xbf16>
    %cst_13 = arith.constant dense<0.000000e+00> : vector<256x64xf32>
    %19 = tpu.matmul %16, %18, %cst_13 {dimension_numbers = #tpu.dot_dimension_numbers<[1], [0], [0], [1], [0, 0, 1, 1], [], []>} : vector<256x4xbf16>, vector<4x64xbf16>, vector<256x64xf32> -> vector<256x64xf32>
    %20 = arith.addf %14, %19 : vector<256x64xf32>
    %21 = vector.extract_strided_slice %1 {offsets = [1, 0, 0], sizes = [16, 16, 4], strides = [1, 1, 1]} : vector<18x18x4xbf16> to vector<16x16x4xbf16>
    %22 = vector.shape_cast %21 : vector<16x16x4xbf16> to vector<256x4xbf16>
    %c3 = arith.constant 3 : index
    %c0_14 = arith.constant 0 : index
    %c0_15 = arith.constant 0 : index
    %23 = vector.load %arg3[%c3, %c0_14, %c0_15] : memref<9x4x64xbf16, #tpu.memory_space<vmem>>, vector<1x4x64xbf16>
    %24 = vector.shape_cast %23 : vector<1x4x64xbf16> to vector<4x64xbf16>
    %cst_16 = arith.constant dense<0.000000e+00> : vector<256x64xf32>
    %25 = tpu.matmul %22, %24, %cst_16 {dimension_numbers = #tpu.dot_dimension_numbers<[1], [0], [0], [1], [0, 0, 1, 1], [], []>} : vector<256x4xbf16>, vector<4x64xbf16>, vector<256x64xf32> -> vector<256x64xf32>
    %26 = arith.addf %20, %25 : vector<256x64xf32>
    %27 = vector.extract_strided_slice %1 {offsets = [1, 1, 0], sizes = [16, 16, 4], strides = [1, 1, 1]} : vector<18x18x4xbf16> to vector<16x16x4xbf16>
    %28 = vector.shape_cast %27 : vector<16x16x4xbf16> to vector<256x4xbf16>
    %c4 = arith.constant 4 : index
    %c0_17 = arith.constant 0 : index
    %c0_18 = arith.constant 0 : index
    %29 = vector.load %arg3[%c4, %c0_17, %c0_18] : memref<9x4x64xbf16, #tpu.memory_space<vmem>>, vector<1x4x64xbf16>
    %30 = vector.shape_cast %29 : vector<1x4x64xbf16> to vector<4x64xbf16>
    %cst_19 = arith.constant dense<0.000000e+00> : vector<256x64xf32>
    %31 = tpu.matmul %28, %30, %cst_19 {dimension_numbers = #tpu.dot_dimension_numbers<[1], [0], [0], [1], [0, 0, 1, 1], [], []>} : vector<256x4xbf16>, vector<4x64xbf16>, vector<256x64xf32> -> vector<256x64xf32>
    %32 = arith.addf %26, %31 : vector<256x64xf32>
    %33 = vector.extract_strided_slice %1 {offsets = [1, 2, 0], sizes = [16, 16, 4], strides = [1, 1, 1]} : vector<18x18x4xbf16> to vector<16x16x4xbf16>
    %34 = vector.shape_cast %33 : vector<16x16x4xbf16> to vector<256x4xbf16>
    %c5 = arith.constant 5 : index
    %c0_20 = arith.constant 0 : index
    %c0_21 = arith.constant 0 : index
    %35 = vector.load %arg3[%c5, %c0_20, %c0_21] : memref<9x4x64xbf16, #tpu.memory_space<vmem>>, vector<1x4x64xbf16>
    %36 = vector.shape_cast %35 : vector<1x4x64xbf16> to vector<4x64xbf16>
    %cst_22 = arith.constant dense<0.000000e+00> : vector<256x64xf32>
    %37 = tpu.matmul %34, %36, %cst_22 {dimension_numbers = #tpu.dot_dimension_numbers<[1], [0], [0], [1], [0, 0, 1, 1], [], []>} : vector<256x4xbf16>, vector<4x64xbf16>, vector<256x64xf32> -> vector<256x64xf32>
    %38 = arith.addf %32, %37 : vector<256x64xf32>
    %39 = vector.extract_strided_slice %1 {offsets = [2, 0, 0], sizes = [16, 16, 4], strides = [1, 1, 1]} : vector<18x18x4xbf16> to vector<16x16x4xbf16>
    %40 = vector.shape_cast %39 : vector<16x16x4xbf16> to vector<256x4xbf16>
    %c6 = arith.constant 6 : index
    %c0_23 = arith.constant 0 : index
    %c0_24 = arith.constant 0 : index
    %41 = vector.load %arg3[%c6, %c0_23, %c0_24] : memref<9x4x64xbf16, #tpu.memory_space<vmem>>, vector<1x4x64xbf16>
    %42 = vector.shape_cast %41 : vector<1x4x64xbf16> to vector<4x64xbf16>
    %cst_25 = arith.constant dense<0.000000e+00> : vector<256x64xf32>
    %43 = tpu.matmul %40, %42, %cst_25 {dimension_numbers = #tpu.dot_dimension_numbers<[1], [0], [0], [1], [0, 0, 1, 1], [], []>} : vector<256x4xbf16>, vector<4x64xbf16>, vector<256x64xf32> -> vector<256x64xf32>
    %44 = arith.addf %38, %43 : vector<256x64xf32>
    %45 = vector.extract_strided_slice %1 {offsets = [2, 1, 0], sizes = [16, 16, 4], strides = [1, 1, 1]} : vector<18x18x4xbf16> to vector<16x16x4xbf16>
    %46 = vector.shape_cast %45 : vector<16x16x4xbf16> to vector<256x4xbf16>
    %c7 = arith.constant 7 : index
    %c0_26 = arith.constant 0 : index
    %c0_27 = arith.constant 0 : index
    %47 = vector.load %arg3[%c7, %c0_26, %c0_27] : memref<9x4x64xbf16, #tpu.memory_space<vmem>>, vector<1x4x64xbf16>
    %48 = vector.shape_cast %47 : vector<1x4x64xbf16> to vector<4x64xbf16>
    %cst_28 = arith.constant dense<0.000000e+00> : vector<256x64xf32>
    %49 = tpu.matmul %46, %48, %cst_28 {dimension_numbers = #tpu.dot_dimension_numbers<[1], [0], [0], [1], [0, 0, 1, 1], [], []>} : vector<256x4xbf16>, vector<4x64xbf16>, vector<256x64xf32> -> vector<256x64xf32>
    %50 = arith.addf %44, %49 : vector<256x64xf32>
    %51 = vector.extract_strided_slice %1 {offsets = [2, 2, 0], sizes = [16, 16, 4], strides = [1, 1, 1]} : vector<18x18x4xbf16> to vector<16x16x4xbf16>
    %52 = vector.shape_cast %51 : vector<16x16x4xbf16> to vector<256x4xbf16>
    %c8 = arith.constant 8 : index
    %c0_29 = arith.constant 0 : index
    %c0_30 = arith.constant 0 : index
    %53 = vector.load %arg3[%c8, %c0_29, %c0_30] : memref<9x4x64xbf16, #tpu.memory_space<vmem>>, vector<1x4x64xbf16>
    %54 = vector.shape_cast %53 : vector<1x4x64xbf16> to vector<4x64xbf16>
    %cst_31 = arith.constant dense<0.000000e+00> : vector<256x64xf32>
    %55 = tpu.matmul %52, %54, %cst_31 {dimension_numbers = #tpu.dot_dimension_numbers<[1], [0], [0], [1], [0, 0, 1, 1], [], []>} : vector<256x4xbf16>, vector<4x64xbf16>, vector<256x64xf32> -> vector<256x64xf32>
    %56 = arith.addf %50, %55 : vector<256x64xf32>
    %c0_32 = arith.constant 0 : index
    %c0_33 = arith.constant 0 : index
    %57 = vector.load %arg4[%c0_32, %c0_33] : memref<1x64xf32, #tpu.memory_space<vmem>>, vector<1x64xf32>
    %58 = vector.broadcast %57 : vector<1x64xf32> to vector<256x64xf32>
    %59 = arith.addf %56, %58 : vector<256x64xf32>
    %c0_34 = arith.constant 0 : index
    %c0_35 = arith.constant 0 : index
    %60 = memref.load %arg5[%c0_34, %c0_35] : memref<1x1xf32, #tpu.memory_space<smem>>
    %cst_36 = arith.constant 0.000000e+00 : f32
    %61 = vector.broadcast %cst_36 : f32 to vector<256x64xf32>
    %62 = arith.cmpf oge, %59, %61 : vector<256x64xf32>
    %63 = vector.broadcast %60 : f32 to vector<256x64xf32>
    %64 = arith.mulf %63, %59 : vector<256x64xf32>
    %65 = arith.select %62, %59, %64 : vector<256x64xi1>, vector<256x64xf32>
    %66 = vector.shape_cast %65 : vector<256x64xf32> to vector<16x16x64xf32>
    %67 = tpu.concatenate %66, %66 in 2 : vector<16x16x64xf32>, vector<16x16x64xf32> -> vector<16x16x128xf32>
    %68 = vector.shape_cast %67 : vector<16x16x128xf32> to vector<16x1x16x128xf32>
    %69 = vector.shape_cast %68 : vector<16x1x16x128xf32> to vector<16x1x16x128xf32>
    %70 = vector.broadcast %69 : vector<16x1x16x128xf32> to vector<16x2x16x128xf32>
    %c0_37 = arith.constant 0 : index
    %c0_38 = arith.constant 0 : index
    %c0_39 = arith.constant 0 : index
    %c0_40 = arith.constant 0 : index
    %c0_41 = arith.constant 0 : index
    %71 = vector.load %arg6[%c0_37, %c0_38, %c0_39, %c0_40, %c0_41] : memref<1x16x2x16x128xf32, #tpu.memory_space<vmem>>, vector<1x16x2x16x128xf32>
    %72 = vector.shape_cast %71 : vector<1x16x2x16x128xf32> to vector<16x2x16x128xf32>
    %73 = vector.shape_cast %70 : vector<16x2x16x128xf32> to vector<1x16x2x16x128xf32>
    tpu.vector_store %arg6[%c0_37, %c0_38, %c0_39, %c0_40, %c0_41], %73 {strides = array<i32>} : memref<1x16x2x16x128xf32, #tpu.memory_space<vmem>>, vector<1x16x2x16x128xf32>,
    return
  }
  func.func @transform_0(%arg0: i32, %arg1: i32) -> (i32, i32, i32, i32, i32) {
    %c0_i32 = arith.constant 0 : i32
    %c0_i32_0 = arith.constant 0 : i32
    %c0_i32_1 = arith.constant 0 : i32
    %c0_i32_2 = arith.constant 0 : i32
    return %arg0, %arg1, %c0_i32, %c0_i32_0, %c0_i32_1 : i32, i32, i32, i32, i32
  }
  func.func @transform_1(%arg0: i32, %arg1: i32) -> (i32, i32, i32) {
    %c0_i32 = arith.constant 0 : i32
    %c0_i32_0 = arith.constant 0 : i32
    %c0_i32_1 = arith.constant 0 : i32
    %c0_i32_2 = arith.constant 0 : i32
    return %c0_i32, %c0_i32_0, %c0_i32_1 : i32, i32, i32
  }
  func.func @transform_2(%arg0: i32, %arg1: i32) -> (i32, i32) {
    %c0_i32 = arith.constant 0 : i32
    %c0_i32_0 = arith.constant 0 : i32
    %c0_i32_1 = arith.constant 0 : i32
    return %c0_i32, %c0_i32_0 : i32, i32
  }
  func.func @transform_3(%arg0: i32, %arg1: i32) -> (i32, i32) {
    %c0_i32 = arith.constant 0 : i32
    %c0_i32_0 = arith.constant 0 : i32
    %c0_i32_1 = arith.constant 0 : i32
    return %c0_i32, %c0_i32_0 : i32, i32
  }
  func.func @transform_4(%arg0: i32, %arg1: i32) -> (i32, i32, i32, i32, i32) {
    %c0_i32 = arith.constant 0 : i32
    %c0_i32_0 = arith.constant 0 : i32
    %c0_i32_1 = arith.constant 0 : i32
    %c0_i32_2 = arith.constant 0 : i32
    return %arg0, %arg1, %c0_i32, %c0_i32_0, %c0_i32_1 : i32, i32, i32, i32, i32
  }
}

</mosaic_0001>

<llo_original>
// kernel: tpu_custom_call.1
$region0: #{tpu_custom_call.1}
  #allocation0 [shape = 'u32[]', space=smem, size = 0x4, offset = 0x4, fixed_abs, tag = 'smem constant byte address 0x4 - core index']
  #allocation1 [shape = 'u32[144,128]{1,0:T(1,128)}', space=vmem, size = 0x12000, scoped, tag = 'internal scratch']
  #allocation2 [shape = 'f32[1,1]{1,0:T(1,128)S(6)}', space=smem, size = 0x200, scoped, tag = 'scoped memory for tpu_custom_call.1']
  %s0 = inlined_call_operand.vmem [shape: bf16[2,1,18,18,4], index: 0, kind: input, shape index: {}]
  %s1 = inlined_call_operand.vmem [shape: bf16[9,4,64], index: 1, kind: input, shape index: {}]
  %s2 = inlined_call_operand.vmem [shape: f32[1,64], index: 2, kind: input, shape index: {}]
  %s3 = inlined_call_operand.<no memory space> [shape: f32[1,1], index: 3, kind: input, shape index: {}]
  %s4 = inlined_call_operand.hbm [shape: f32[2,16,2,16,128], index: 4, kind: output, shape index: {}]
  %s5 = sld [smem:[#allocation0]]
  $region49: #{tpu_custom_call.1} parent=0
    _
  %s7 = ssub.s32 1, %s5
  %s8 = scalar_select 0, %s7, %s5
  %9 = sst [smem:[#allocation2]] %s3
  $region1: #{tpu_custom_call.1} parent=0
    #allocation3 [shape = 'u8[524288]{0}', space=vmem, size = 0x80000, scoped, tag = 'output window, operand 0']
    #allocation4 [shape = 's32[2]{0}', space=sflag, size = 0x8, scoped, tag = 'scoped memory for tpu_custom_call.1']
    %10 = vsyncpa [#allocation4], 0
    %s11 = scalar_lea.sflag [#allocation4], 1
    %12 = vsyncpa %s11, 0
    loop: start=0, step=1, limit=4
    $region2: #{tpu_custom_call.1} parent=1 // loop_pre_header
      _
    $region3: #{tpu_custom_call.1} parent=1 // loop_header
      %s14 = sphi 0, %s18
      %p15 = scmp.ge.s32.totalorder %s14, 4
      %s21 = sphi 0, %s33
      %s22 = sphi 0, %s29
      %s23 = sphi 0, %s21
      %s24 = sphi 0, %s22
      %s25 = sphi 0, %s23
      %s26 = sphi 0, %s24
      %s38 = sphi 0, %s40
      %s41 = sphi 0, %s38
      %s42 = sphi 0, %s41
      %s58 = sphi 0, %s42
      %s62 = sphi 0, %s62
      %s64 = sphi 0, %s62
      %s65 = sphi 0, %s64
      %s79 = sphi 0, %s65
      %s83 = sphi 0, %s83
      %s85 = sphi 0, %s83
      %s86 = sphi 0, %s85
      %s100 = sphi 0, %s86
      %s104 = sphi 0, %s104
      %s106 = sphi 0, %s104
      %s107 = sphi 0, %s106
      %s121 = sphi 0, %s107
      %s129 = sphi 0, %s131
      %s132 = sphi 0, %s129
      %s133 = sphi 0, %s132
      %s149 = sphi 0, %s133
    $region4: #{tpu_custom_call.1} parent=1 // loop_header_branch
      %17 = sbr.rel (%p15) target = $region8
    $region5: #{tpu_custom_call.1} parent=1 // loop_body
      %s19 = ssub.s32 %s14, 1
      %s20 = ssub.s32 %s14, 2
      %s27 = sadd.s32 1, %s22
      %p28 = scmp.ge.s32.totalorder %s27, 1
      %s29 = scalar_select %p28, 0, %s27
      %s30 = sadd.s32 1, %s21
      %s31 = scalar_select %p28, %s30, %s21
      %p32 = scmp.ge.s32.totalorder %s31, 2
      %s33 = scalar_select %p32, 0, %s31
      %s34 = ssub.s32 %s21, %s33
      %s35 = ssub.s32 %s22, %s29
      %s36 = sor.u32 %s34, %s35
      %p37 = scmp.eq.s32.totalorder %s36, 0
      %s39 = sadd.s32 %s38, 1
      %s40 = scalar_select %p37, %s38, %s39
      %p43 = pneg %p37
      %p44 = scmp.eq.s32.totalorder %s14, 1
      %p45 = por %p43, %p44
      %p46 = scmp.ne.s32.totalorder %s38, %s41
      %p47 = scmp.eq.s32.totalorder %s14, 0
      %p48 = por %p46, %p47
      %p49 = scmp.ne.s32.totalorder %s38, %s41
      %p50 = scmp.eq.s32.totalorder %s19, 1
      %p51 = por %p49, %p50
      %p52 = scmp.ne.s32.totalorder %s41, %s42
      %p53 = scmp.eq.s32.totalorder %s19, 0
      %p54 = por %p52, %p53
      %p55 = scmp.ne.s32.totalorder %s41, %s42
      %p56 = scmp.eq.s32.totalorder %s20, 1
      %p57 = por %p55, %p56
      %p59 = scmp.ne.s32.totalorder %s42, %s58
      %p60 = scmp.eq.s32.totalorder %s20, 0
      %p61 = por %p59, %p60
      %s63 = sadd.s32 %s62, 1
      %p66 = scmp.eq.s32.totalorder %s14, 1
      %p67 = scmp.ne.s32.totalorder %s62, %s64
      %p68 = scmp.eq.s32.totalorder %s14, 0
      %p69 = por %p67, %p68
      %p70 = scmp.ne.s32.totalorder %s62, %s64
      %p71 = scmp.eq.s32.totalorder %s19, 1
      %p72 = por %p70, %p71
      %p73 = scmp.ne.s32.totalorder %s64, %s65
      %p74 = scmp.eq.s32.totalorder %s19, 0
      %p75 = por %p73, %p74
      %p76 = scmp.ne.s32.totalorder %s64, %s65
      %p77 = scmp.eq.s32.totalorder %s20, 1
      %p78 = por %p76, %p77
      %p80 = scmp.ne.s32.totalorder %s65, %s79
      %p81 = scmp.eq.s32.totalorder %s20, 0
      %p82 = por %p80, %p81
      %s84 = sadd.s32 %s83, 1
      %p87 = scmp.eq.s32.totalorder %s14, 1
      %p88 = scmp.ne.s32.totalorder %s83, %s85
      %p89 = scmp.eq.s32.totalorder %s14, 0
      %p90 = por %p88, %p89
      %p91 = scmp.ne.s32.totalorder %s83, %s85
      %p92 = scmp.eq.s32.totalorder %s19, 1
      %p93 = por %p91, %p92
      %p94 = scmp.ne.s32.totalorder %s85, %s86
      %p95 = scmp.eq.s32.totalorder %s19, 0
      %p96 = por %p94, %p95
      %p97 = scmp.ne.s32.totalorder %s85, %s86
      %p98 = scmp.eq.s32.totalorder %s20, 1
      %p99 = por %p97, %p98
      %p101 = scmp.ne.s32.totalorder %s86, %s100
      %p102 = scmp.eq.s32.totalorder %s20, 0
      %p103 = por %p101, %p102
      %s105 = sadd.s32 %s104, 1
      %p108 = scmp.eq.s32.totalorder %s14, 1
      %p109 = scmp.ne.s32.totalorder %s104, %s106
      %p110 = scmp.eq.s32.totalorder %s14, 0
      %p111 = por %p109, %p110
      %p112 = scmp.ne.s32.totalorder %s104, %s106
      %p113 = scmp.eq.s32.totalorder %s19, 1
      %p114 = por %p112, %p113
      %p115 = scmp.ne.s32.totalorder %s106, %s107
      %p116 = scmp.eq.s32.totalorder %s19, 0
      %p117 = por %p115, %p116
      %p118 = scmp.ne.s32.totalorder %s106, %s107
      %p119 = scmp.eq.s32.totalorder %s20, 1
      %p120 = por %p118, %p119
      %p122 = scmp.ne.s32.totalorder %s107, %s121
      %p123 = scmp.eq.s32.totalorder %s20, 0
      %p124 = por %p122, %p123
      %s125 = ssub.s32 %s21, %s33
      %s126 = ssub.s32 %s22, %s29
      %s127 = sor.u32 %s125, %s126
      %p128 = scmp.eq.s32.totalorder %s127, 0
      %s130 = sadd.s32 %s129, 1
      %s131 = scalar_select %p128, %s129, %s130
      %p134 = pneg %p128
      %p135 = scmp.eq.s32.totalorder %s14, 1
      %p136 = por %p134, %p135
      %p137 = scmp.ne.s32.totalorder %s129, %s132
      %p138 = scmp.eq.s32.totalorder %s14, 0
      %p139 = por %p137, %p138
      %p140 = scmp.ne.s32.totalorder %s129, %s132
      %p141 = scmp.eq.s32.totalorder %s19, 1
      %p142 = por %p140, %p141
      %p143 = scmp.ne.s32.totalorder %s132, %s133
      %p144 = scmp.eq.s32.totalorder %s19, 0
      %p145 = por %p143, %p144
      %p146 = scmp.ne.s32.totalorder %s132, %s133
      %p147 = scmp.eq.s32.totalorder %s20, 1
      %p148 = por %p146, %p147
      %p150 = scmp.ne.s32.totalorder %s133, %s149
      %p151 = scmp.eq.s32.totalorder %s20, 0
      %p152 = por %p150, %p151
      %p153 = scmp.le.s32.totalorder 1, %s14
      %p154 = scmp.lt.s32.totalorder %s14, 3
      %p155 = pnand %p153, %p154
      %p156 = pneg %p155
      // Predicated region
      $region9: #{tpu_custom_call.1} parent=5 // pred_check
        _
      $region10: #{tpu_custom_call.1} parent=5 // pred_check_branch
        %158 = sbr.rel (%p155) target = $region12
      $region11: #{tpu_custom_call.1} parent=5 // pred_region
        %s159 = ssub.s32 %s14, 1
        // Predicated region
        $region13: #{tpu_custom_call.1} parent=11 // pred_check
          %p160 = pneg %p75
        $region14: #{tpu_custom_call.1} parent=11 // pred_check_branch
          %162 = sbr.rel (%p160) target = $region16
        $region15: #{tpu_custom_call.1} parent=11 // pred_region
          _
        $region16: #{tpu_custom_call.1} parent=11 // pred_fallthru
          _
        // Predicated region
        $region17: #{tpu_custom_call.1} parent=11 // pred_check
          %p163 = pneg %p96
        $region18: #{tpu_custom_call.1} parent=11 // pred_check_branch
          %165 = sbr.rel (%p163) target = $region20
        $region19: #{tpu_custom_call.1} parent=11 // pred_region
          _
        $region20: #{tpu_custom_call.1} parent=11 // pred_fallthru
          _
        // Predicated region
        $region21: #{tpu_custom_call.1} parent=11 // pred_check
          %p166 = pneg %p117
        $region22: #{tpu_custom_call.1} parent=11 // pred_check_branch
          %168 = sbr.rel (%p166) target = $region24
        $region23: #{tpu_custom_call.1} parent=11 // pred_region
          _
        $region24: #{tpu_custom_call.1} parent=11 // pred_fallthru
          _
      $region12: #{tpu_custom_call.1} parent=5 // pred_fallthru
        _
      %p169 = scmp.lt.s32.totalorder %s14, 2
      // Predicated region
      $region25: #{tpu_custom_call.1} parent=5 // pred_check
        %p170 = pneg %p169
      $region26: #{tpu_custom_call.1} parent=5 // pred_check_branch
        %172 = sbr.rel (%p170) target = $region28
      $region27: #{tpu_custom_call.1} parent=5 // pred_region
        // Predicated region
        $region29: #{tpu_custom_call.1} parent=27 // pred_check
          %p173 = pneg %p48
        $region30: #{tpu_custom_call.1} parent=27 // pred_check_branch
          %175 = sbr.rel (%p173) target = $region32
        $region31: #{tpu_custom_call.1} parent=27 // pred_region
          %p176 = scmp.lt.s32.totalorder %s21, 1
          %s177 = scalar_select %p176, %s21, 1
          %p178 = scmp.lt.s32.totalorder %s22, 0
          %s179 = scalar_select %p178, %s22, 0
          %s180 = smul.addr %s179, 54
          %s181 = smul.addr %s177, 54
          %s182 = sadd.s32 %s180, %s181
          %s183 = smul.addr %s182, 4
          %s184 = scalar_lea.vmem %s0, %s183
        $region32: #{tpu_custom_call.1} parent=27 // pred_fallthru
          _
      $region28: #{tpu_custom_call.1} parent=5 // pred_fallthru
        _
      %p185 = scmp.le.s32.totalorder 1, %s14
      %p186 = scmp.lt.s32.totalorder %s14, 3
      %p187 = pnand %p185, %p186
      %p188 = pneg %p187
      // Predicated region
      $region33: #{tpu_custom_call.1} parent=5 // pred_check
        _
      $region34: #{tpu_custom_call.1} parent=5 // pred_check_branch
        %190 = sbr.rel (%p187) target = $region36
      $region35: #{tpu_custom_call.1} parent=5 // pred_region
        %s191 = ssub.s32 %s14, 1
        %p192 = scmp.lt.s32.totalorder %s23, 1
        %s193 = scalar_select %p192, %s23, 1
        %p194 = scmp.lt.s32.totalorder %s24, 0
        %s195 = scalar_select %p194, %s24, 0
        %s196 = smul.addr %s195, 54
        %s197 = smul.addr %s193, 54
        %s198 = sadd.s32 %s196, %s197
        %s199 = smul.addr %s198, 4
        %s200 = scalar_lea.vmem %s0, %s199
        %p201 = pneg %p54
        %p202 = pneg %p51
        %p203 = pneg %p75
        %p204 = pneg %p72
        %p205 = pneg %p96
        %p206 = pneg %p93
        %p207 = pneg %p117
        %p208 = pneg %p114
        %p209 = pneg %p145
        %p210 = pneg %p142
        %s211 = sand.u32 %s132, 1
        %s212 = scalar_lea.sflag [#allocation4], %s211
        %s213 = sand.u32 %s132, 1
        %s214 = smul.addr %s213, 512
        %s215 = scalar_lea.vmem [#allocation3], %s214
        %p216 = scmp.lt.s32.totalorder %s23, 1
        %s217 = scalar_select %p216, %s23, 1
        %p218 = scmp.lt.s32.totalorder %s24, 0
        %s219 = scalar_select %p218, %s24, 0
        %s220 = smul.addr %s219, 54
        %s221 = smul.addr %s217, 54
        %s222 = sadd.s32 %s220, %s221
        %s223 = smul.addr %s222, 4
        %s224 = scalar_lea.vmem %s0, %s223
        %s225 = smul.u32 16, %s24
        %v227 = vld [vmem:[%s224] sm:$0xf]
        %v228 = vld [vmem:[%s224 + $0x4] sm:$0xf]
        %v229 = vld [vmem:[%s224 + $0x8] sm:$0x1]
        %v230 = vld [vmem:[%s224 + $0xc] sm:$0xf]
        %v231 = vld [vmem:[%s224 + $0x10] sm:$0xf]
        %v232 = vld [vmem:[%s224 + $0x14] sm:$0x1]
        %v233 = vld [vmem:[%s224 + $0x18] sm:$0xf]
        %v234 = vld [vmem:[%s224 + $0x1c] sm:$0xf]
        %v235 = vld [vmem:[%s224 + $0x20] sm:$0x1]
        %v236 = vld [vmem:[%s224 + $0x24] sm:$0xf]
        %v237 = vld [vmem:[%s224 + $0x28] sm:$0xf]
        %v238 = vld [vmem:[%s224 + $0x2c] sm:$0x1]
        %v239 = vld [vmem:[%s224 + $0x30] sm:$0xf]
        %v240 = vld [vmem:[%s224 + $0x34] sm:$0xf]
        %v241 = vld [vmem:[%s224 + $0x38] sm:$0x1]
        %v242 = vld [vmem:[%s224 + $0x3c] sm:$0xf]
        %v243 = vld [vmem:[%s224 + $0x40] sm:$0xf]
        %v244 = vld [vmem:[%s224 + $0x44] sm:$0x1]
        %v245 = vld [vmem:[%s224 + $0x48] sm:$0xf]
        %v246 = vld [vmem:[%s224 + $0x4c] sm:$0xf]
        %v247 = vld [vmem:[%s224 + $0x50] sm:$0x1]
        %v248 = vld [vmem:[%s224 + $0x54] sm:$0xf]
        %v249 = vld [vmem:[%s224 + $0x58] sm:$0xf]
        %v250 = vld [vmem:[%s224 + $0x5c] sm:$0x1]
        %v251 = vld [vmem:[%s224 + $0x60] sm:$0xf]
        %v252 = vld [vmem:[%s224 + $0x64] sm:$0xf]
        %v253 = vld [vmem:[%s224 + $0x68] sm:$0x1]
        %v254 = vld [vmem:[%s224 + $0x6c] sm:$0xf]
        %v255 = vld [vmem:[%s224 + $0x70] sm:$0xf]
        %v256 = vld [vmem:[%s224 + $0x74] sm:$0x1]
        %v257 = vld [vmem:[%s224 + $0x78] sm:$0xf]
        %v258 = vld [vmem:[%s224 + $0x7c] sm:$0xf]
        %v259 = vld [vmem:[%s224 + $0x80] sm:$0x1]
        %v260 = vld [vmem:[%s224 + $0x84] sm:$0xf]
        %v261 = vld [vmem:[%s224 + $0x88] sm:$0xf]
        %v262 = vld [vmem:[%s224 + $0x8c] sm:$0x1]
        %v263 = vld [vmem:[%s224 + $0x90] sm:$0xf]
        %v264 = vld [vmem:[%s224 + $0x94] sm:$0xf]
        %v265 = vld [vmem:[%s224 + $0x98] sm:$0x1]
        %v266 = vld [vmem:[%s224 + $0x9c] sm:$0xf]
        %v267 = vld [vmem:[%s224 + $0xa0] sm:$0xf]
        %v268 = vld [vmem:[%s224 + $0xa4] sm:$0x1]
        %v269 = vld [vmem:[%s224 + $0xa8] sm:$0xf]
        %v270 = vld [vmem:[%s224 + $0xac] sm:$0xf]
        %v271 = vld [vmem:[%s224 + $0xb0] sm:$0x1]
        %v272 = vld [vmem:[%s224 + $0xb4] sm:$0xf]
        %v273 = vld [vmem:[%s224 + $0xb8] sm:$0xf]
        %v274 = vld [vmem:[%s224 + $0xbc] sm:$0x1]
        %v275 = vld [vmem:[%s224 + $0xc0] sm:$0xf]
        %v276 = vld [vmem:[%s224 + $0xc4] sm:$0xf]
        %v277 = vld [vmem:[%s224 + $0xc8] sm:$0x1]
        %v278 = vld [vmem:[%s224 + $0xcc] sm:$0xf]
        %v279 = vld [vmem:[%s224 + $0xd0] sm:$0xf]
        %v280 = vld [vmem:[%s224 + $0xd4] sm:$0x1]
        %v281 = vld [vmem:[%s1] sm:$0x3]
        %vm282 = vsmask.f32 3328
        %vm283 = vsmask.f32 7440
        %vm284 = vmor %vm282, %vm283
        %v286 = vshrl.u32 %v227, 16
        %v288 = vrot.slane %v286, 4
        %v289 = vshll.u32 %v227, 16
        %v291 = vrot.slane %v289, 5
        %v292 = vor.u32 %v288, %v291
        %v293 = vrot.slane %v292, 4
        %v295 = vshll.u32 %v228, 16
        %v297 = vrot.slane %v295, 5
        %v298 = vsel %vm284, %v293, %v297
        %v299 = vshrl.u32 %v228, 16
        %v301 = vrot.slane %v299, 4
        %v302 = vor.u32 %v301, %v297
        %v303 = vrot.slane %v302, 4
        %v305 = vshll.u32 %v229, 16
        %v307 = vrot.slane %v305, 5
        %v308 = vsel %vm284, %v303, %v307
        %v310 = vshrl.u32 %v230, 16
        %v312 = vrot.slane %v310, 4
        %v313 = vshll.u32 %v230, 16
        %v315 = vrot.slane %v313, 5
        %v316 = vor.u32 %v312, %v315
        %v317 = vrot.slane %v316, 4
        %v319 = vshll.u32 %v231, 16
        %v321 = vrot.slane %v319, 5
        %v322 = vsel %vm284, %v317, %v321
        %v323 = vshrl.u32 %v231, 16
        %v325 = vrot.slane %v323, 4
        %v326 = vor.u32 %v325, %v321
        %v327 = vrot.slane %v326, 4
        %v329 = vshll.u32 %v232, 16
        %v331 = vrot.slane %v329, 5
        %v332 = vsel %vm284, %v327, %v331
        %v334 = vshrl.u32 %v233, 16
        %v336 = vrot.slane %v334, 4
        %v337 = vshll.u32 %v233, 16
        %v339 = vrot.slane %v337, 5
        %v340 = vor.u32 %v336, %v339
        %v341 = vrot.slane %v340, 4
        %v343 = vshll.u32 %v234, 16
        %v345 = vrot.slane %v343, 5
        %v346 = vsel %vm284, %v341, %v345
        %v347 = vshrl.u32 %v234, 16
        %v349 = vrot.slane %v347, 4
        %v350 = vor.u32 %v349, %v345
        %v351 = vrot.slane %v350, 4
        %v353 = vshll.u32 %v235, 16
        %v355 = vrot.slane %v353, 5
        %v356 = vsel %vm284, %v351, %v355
        %v358 = vshrl.u32 %v236, 16
        %v360 = vrot.slane %v358, 4
        %v361 = vshll.u32 %v236, 16
        %v363 = vrot.slane %v361, 5
        %v364 = vor.u32 %v360, %v363
        %v365 = vrot.slane %v364, 4
        %v367 = vshll.u32 %v237, 16
        %v369 = vrot.slane %v367, 5
        %v370 = vsel %vm284, %v365, %v369
        %v371 = vshrl.u32 %v237, 16
        %v373 = vrot.slane %v371, 4
        %v374 = vor.u32 %v373, %v369
        %v375 = vrot.slane %v374, 4
        %v377 = vshll.u32 %v238, 16
        %v379 = vrot.slane %v377, 5
        %v380 = vsel %vm284, %v375, %v379
        %v382 = vshrl.u32 %v239, 16
        %v384 = vrot.slane %v382, 4
        %v385 = vshll.u32 %v239, 16
        %v387 = vrot.slane %v385, 5
        %v388 = vor.u32 %v384, %v387
        %v389 = vrot.slane %v388, 4
        %v391 = vshll.u32 %v240, 16
        %v393 = vrot.slane %v391, 5
        %v394 = vsel %vm284, %v389, %v393
        %v395 = vshrl.u32 %v240, 16
        %v397 = vrot.slane %v395, 4
        %v398 = vor.u32 %v397, %v393
        %v399 = vrot.slane %v398, 4
        %v401 = vshll.u32 %v241, 16
        %v403 = vrot.slane %v401, 5
        %v404 = vsel %vm284, %v399, %v403
        %v406 = vshrl.u32 %v242, 16
        %v408 = vrot.slane %v406, 4
        %v409 = vshll.u32 %v242, 16
        %v411 = vrot.slane %v409, 5
        %v412 = vor.u32 %v408, %v411
        %v413 = vrot.slane %v412, 4
        %v415 = vshll.u32 %v243, 16
        %v417 = vrot.slane %v415, 5
        %v418 = vsel %vm284, %v413, %v417
        %v419 = vshrl.u32 %v243, 16
        %v421 = vrot.slane %v419, 4
        %v422 = vor.u32 %v421, %v417
        %v423 = vrot.slane %v422, 4
        %v425 = vshll.u32 %v244, 16
        %v427 = vrot.slane %v425, 5
        %v428 = vsel %vm284, %v423, %v427
        %v430 = vshrl.u32 %v245, 16
        %v432 = vrot.slane %v430, 4
        %v433 = vshll.u32 %v245, 16
        %v435 = vrot.slane %v433, 5
        %v436 = vor.u32 %v432, %v435
        %v437 = vrot.slane %v436, 4
        %v439 = vshll.u32 %v246, 16
        %v441 = vrot.slane %v439, 5
        %v442 = vsel %vm284, %v437, %v441
        %v443 = vshrl.u32 %v246, 16
        %v445 = vrot.slane %v443, 4
        %v446 = vor.u32 %v445, %v441
        %v447 = vrot.slane %v446, 4
        %v449 = vshll.u32 %v247, 16
        %v451 = vrot.slane %v449, 5
        %v452 = vsel %vm284, %v447, %v451
        %v454 = vshrl.u32 %v248, 16
        %v456 = vrot.slane %v454, 4
        %v457 = vshll.u32 %v248, 16
        %v459 = vrot.slane %v457, 5
        %v460 = vor.u32 %v456, %v459
        %v461 = vrot.slane %v460, 4
        %v463 = vshll.u32 %v249, 16
        %v465 = vrot.slane %v463, 5
        %v466 = vsel %vm284, %v461, %v465
        %v467 = vshrl.u32 %v249, 16
        %v469 = vrot.slane %v467, 4
        %v470 = vor.u32 %v469, %v465
        %v471 = vrot.slane %v470, 4
        %v473 = vshll.u32 %v250, 16
        %v475 = vrot.slane %v473, 5
        %v476 = vsel %vm284, %v471, %v475
        %v478 = vshrl.u32 %v251, 16
        %v480 = vrot.slane %v478, 4
        %v481 = vshll.u32 %v251, 16
        %v483 = vrot.slane %v481, 5
        %v484 = vor.u32 %v480, %v483
        %v485 = vrot.slane %v484, 4
        %v487 = vshll.u32 %v252, 16
        %v489 = vrot.slane %v487, 5
        %v490 = vsel %vm284, %v485, %v489
        %v491 = vshrl.u32 %v252, 16
        %v493 = vrot.slane %v491, 4
        %v494 = vor.u32 %v493, %v489
        %v495 = vrot.slane %v494, 4
        %v497 = vshll.u32 %v253, 16
        %v499 = vrot.slane %v497, 5
        %v500 = vsel %vm284, %v495, %v499
        %v502 = vshrl.u32 %v254, 16
        %v504 = vrot.slane %v502, 4
        %v505 = vshll.u32 %v254, 16
        %v507 = vrot.slane %v505, 5
        %v508 = vor.u32 %v504, %v507
        %v509 = vrot.slane %v508, 4
        %v511 = vshll.u32 %v255, 16
        %v513 = vrot.slane %v511, 5
        %v514 = vsel %vm284, %v509, %v513
        %v515 = vshrl.u32 %v255, 16
        %v517 = vrot.slane %v515, 4
        %v518 = vor.u32 %v517, %v513
        %v519 = vrot.slane %v518, 4
        %v521 = vshll.u32 %v256, 16
        %v523 = vrot.slane %v521, 5
        %v524 = vsel %vm284, %v519, %v523
        %v526 = vshrl.u32 %v257, 16
        %v528 = vrot.slane %v526, 4
        %v529 = vshll.u32 %v257, 16
        %v531 = vrot.slane %v529, 5
        %v532 = vor.u32 %v528, %v531
        %v533 = vrot.slane %v532, 4
        %v535 = vshll.u32 %v258, 16
        %v537 = vrot.slane %v535, 5
        %v538 = vsel %vm284, %v533, %v537
        %v539 = vshrl.u32 %v258, 16
        %v541 = vrot.slane %v539, 4
        %v542 = vor.u32 %v541, %v537
        %v543 = vrot.slane %v542, 4
        %v545 = vshll.u32 %v259, 16
        %v547 = vrot.slane %v545, 5
        %v548 = vsel %vm284, %v543, %v547
        %v550 = vshrl.u32 %v260, 16
        %v552 = vrot.slane %v550, 4
        %v553 = vshll.u32 %v260, 16
        %v555 = vrot.slane %v553, 5
        %v556 = vor.u32 %v552, %v555
        %v557 = vrot.slane %v556, 4
        %v559 = vshll.u32 %v261, 16
        %v561 = vrot.slane %v559, 5
        %v562 = vsel %vm284, %v557, %v561
        %v563 = vshrl.u32 %v261, 16
        %v565 = vrot.slane %v563, 4
        %v566 = vor.u32 %v565, %v561
        %v567 = vrot.slane %v566, 4
        %v569 = vshll.u32 %v262, 16
        %v571 = vrot.slane %v569, 5
        %v572 = vsel %vm284, %v567, %v571
        %v574 = vshrl.u32 %v263, 16
        %v576 = vrot.slane %v574, 4
        %v577 = vshll.u32 %v263, 16
        %v579 = vrot.slane %v577, 5
        %v580 = vor.u32 %v576, %v579
        %v581 = vrot.slane %v580, 4
        %v583 = vshll.u32 %v264, 16
        %v585 = vrot.slane %v583, 5
        %v586 = vsel %vm284, %v581, %v585
        %v587 = vshrl.u32 %v264, 16
        %v589 = vrot.slane %v587, 4
        %v590 = vor.u32 %v589, %v585
        %v591 = vrot.slane %v590, 4
        %v593 = vshll.u32 %v265, 16
        %v595 = vrot.slane %v593, 5
        %v596 = vsel %vm284, %v591, %v595
        %v598 = vshrl.u32 %v266, 16
        %v600 = vrot.slane %v598, 4
        %v601 = vshll.u32 %v266, 16
        %v603 = vrot.slane %v601, 5
        %v604 = vor.u32 %v600, %v603
        %v605 = vrot.slane %v604, 4
        %v607 = vshll.u32 %v267, 16
        %v609 = vrot.slane %v607, 5
        %v610 = vsel %vm284, %v605, %v609
        %v611 = vshrl.u32 %v267, 16
        %v613 = vrot.slane %v611, 4
        %v614 = vor.u32 %v613, %v609
        %v615 = vrot.slane %v614, 4
        %v617 = vshll.u32 %v268, 16
        %v619 = vrot.slane %v617, 5
        %v620 = vsel %vm284, %v615, %v619
        %v622 = vshrl.u32 %v269, 16
        %v624 = vrot.slane %v622, 4
        %v625 = vshll.u32 %v269, 16
        %v627 = vrot.slane %v625, 5
        %v628 = vor.u32 %v624, %v627
        %v629 = vrot.slane %v628, 4
        %v631 = vshll.u32 %v270, 16
        %v633 = vrot.slane %v631, 5
        %v634 = vsel %vm284, %v629, %v633
        %v635 = vshrl.u32 %v270, 16
        %v637 = vrot.slane %v635, 4
        %v638 = vor.u32 %v637, %v633
        %v639 = vrot.slane %v638, 4
        %v641 = vshll.u32 %v271, 16
        %v643 = vrot.slane %v641, 5
        %v644 = vsel %vm284, %v639, %v643
        %v646 = vshrl.u32 %v272, 16
        %v648 = vrot.slane %v646, 4
        %v649 = vshll.u32 %v272, 16
        %v651 = vrot.slane %v649, 5
        %v652 = vor.u32 %v648, %v651
        %v653 = vrot.slane %v652, 4
        %v655 = vshll.u32 %v273, 16
        %v657 = vrot.slane %v655, 5
        %v658 = vsel %vm284, %v653, %v657
        %v659 = vshrl.u32 %v273, 16
        %v661 = vrot.slane %v659, 4
        %v662 = vor.u32 %v661, %v657
        %v663 = vrot.slane %v662, 4
        %v665 = vshll.u32 %v274, 16
        %v667 = vrot.slane %v665, 5
        %v668 = vsel %vm284, %v663, %v667
        %s669 = scalar_lea.vmem %s1, 2
        %v670 = vld [vmem:[%s669] sm:$0x3]
        %v671 = vunpack.c.l.b16 %v298
        %v672 = vunpack.c.l.b16 %v308
        %v673 = vunpack.c.l.b16 %v322
        %v674 = vunpack.c.l.b16 %v332
        %v675 = vunpack.c.l.b16 %v346
        %v676 = vunpack.c.l.b16 %v356
        %v677 = vunpack.c.l.b16 %v370
        %v678 = vunpack.c.l.b16 %v380
        %v679 = vunpack.c.l.b16 %v394
        %v680 = vunpack.c.l.b16 %v404
        %v681 = vunpack.c.l.b16 %v418
        %v682 = vunpack.c.l.b16 %v428
        %v683 = vunpack.c.l.b16 %v442
        %v684 = vunpack.c.l.b16 %v452
        %v685 = vunpack.c.l.b16 %v466
        %v686 = vunpack.c.l.b16 %v476
        %v687 = vunpack.c.l.b16 %v490
        %v688 = vunpack.c.l.b16 %v500
        %v689 = vunpack.c.l.b16 %v514
        %v690 = vunpack.c.l.b16 %v524
        %v691 = vunpack.c.l.b16 %v538
        %v692 = vunpack.c.l.b16 %v548
        %v693 = vunpack.c.l.b16 %v562
        %v694 = vunpack.c.l.b16 %v572
        %v695 = vunpack.c.l.b16 %v586
        %v696 = vunpack.c.l.b16 %v596
        %v697 = vunpack.c.l.b16 %v610
        %v698 = vunpack.c.l.b16 %v620
        %v699 = vunpack.c.l.b16 %v634
        %v700 = vunpack.c.l.b16 %v644
        %v701 = vunpack.c.l.b16 %v658
        %v702 = vunpack.c.l.b16 %v668
        %v703 = vpack.c.b16 %v672, %v671
        %v704 = vpack.c.b16 %v674, %v673
        %v705 = vpack.c.b16 %v676, %v675
        %v706 = vpack.c.b16 %v678, %v677
        %v707 = vpack.c.b16 %v680, %v679
        %v708 = vpack.c.b16 %v682, %v681
        %v709 = vpack.c.b16 %v684, %v683
        %v710 = vpack.c.b16 %v686, %v685
        %v711 = vpack.c.b16 %v688, %v687
        %v712 = vpack.c.b16 %v690, %v689
        %v713 = vpack.c.b16 %v692, %v691
        %v714 = vpack.c.b16 %v694, %v693
        %v715 = vpack.c.b16 %v696, %v695
        %v716 = vpack.c.b16 %v698, %v697
        %v717 = vpack.c.b16 %v700, %v699
        %v718 = vpack.c.b16 %v702, %v701
        %vm719 = vcmask 31744
        %v721 = vsel %vm719, %v703, 0
        %v724 = vsel %vm719, %v704, 0
        %v727 = vsel %vm719, %v705, 0
        %v730 = vsel %vm719, %v706, 0
        %v733 = vsel %vm719, %v707, 0
        %v736 = vsel %vm719, %v708, 0
        %v739 = vsel %vm719, %v709, 0
        %v742 = vsel %vm719, %v710, 0
        %v745 = vsel %vm719, %v711, 0
        %v748 = vsel %vm719, %v712, 0
        %v751 = vsel %vm719, %v713, 0
        %v754 = vsel %vm719, %v714, 0
        %v757 = vsel %vm719, %v715, 0
        %v760 = vsel %vm719, %v716, 0
        %v763 = vsel %vm719, %v717, 0
        %v766 = vsel %vm719, %v718, 0
        %vm768 = vcmask 1041408
        %v770 = vsel %vm768, %v670, 0
        %772 = vmatprep.subr.bf16.mxu0 0
        %773 = vmatpush1.bf16.msra.mxu0 0
        %774 = vmatprep.subr.bf16.mxu0 0
        %775 = vmatpush1.bf16.msra.mxu0 0
        %776 = vmatprep.subr.bf16.mxu0 0
        %777 = vmatpush1.bf16.msra.mxu0 0
        %778 = vmatprep.subr.bf16.mxu0 0
        %779 = vmatpush1.bf16.msra.mxu0 0
        %780 = vmatprep.subr.bf16.mxu0 0
        %781 = vmatpush1.bf16.msra.mxu0 0
        %782 = vmatprep.subr.bf16.mxu0 0
        %783 = vmatpush1.bf16.msra.mxu0 0
        %784 = vmatprep.subr.bf16.mxu0 0
        %785 = vmatpush1.bf16.msra.mxu0 0
        %786 = vmatprep.subr.bf16.mxu0 0
        %787 = vmatpush1.bf16.msra.mxu0 %v770
        %788 = vmatprep.subr.bf16.mxu0 0
        %789 = vmatpush2.bf16.msra.mxu0 0
        %790 = vmatprep.subr.bf16.mxu0 0
        %791 = vmatpush2.bf16.msra.mxu0 0
        %792 = vmatprep.subr.bf16.mxu0 0
        %793 = vmatpush2.bf16.msra.mxu0 0
        %794 = vmatprep.subr.bf16.mxu0 0
        %795 = vmatpush2.bf16.msra.mxu0 0
        %796 = vmatprep.subr.bf16.mxu0 0
        %797 = vmatpush2.bf16.msra.mxu0 0
        %798 = vmatprep.subr.bf16.mxu0 0
        %799 = vmatpush2.bf16.msra.mxu0 0
        %800 = vmatprep.subr.bf16.mxu0 0
        %801 = vmatpush2.bf16.msra.mxu0 0
        %802 = vmatprep.subr.bf16.mxu0 0
        %803 = vmatpush2.bf16.msra.mxu0 0
        %804 = vmatprep.mubr.bf16.mxu0 0
        %805 = vmatmul.mubr.bf16.gmra.mxu0 %v721
        %v806 = vpop.f32.mrf.mxu0
        %v807 = vadd.f32 0.0, %v806
        %v808 = vpop.f32.mrf.mxu0
        %v809 = vpop.f32.mrf.mxu0
        %v810 = vadd.f32 0.0, %v809
        %v811 = vpop.f32.mrf.mxu0
        %812 = vmatprep.mubr.bf16.mxu0 0
        %813 = vmatmul.mubr.bf16.gmra.mxu0 %v724
        %v814 = vpop.f32.mrf.mxu0
        %v815 = vadd.f32 0.0, %v814
        %v816 = vpop.f32.mrf.mxu0
        %v817 = vpop.f32.mrf.mxu0
        %v818 = vadd.f32 0.0, %v817
        %v819 = vpop.f32.mrf.mxu0
        %820 = vmatprep.mubr.bf16.mxu0 0
        %821 = vmatmul.mubr.bf16.gmra.mxu0 %v727
        %v822 = vpop.f32.mrf.mxu0
        %v823 = vadd.f32 0.0, %v822
        %v824 = vpop.f32.mrf.mxu0
        %v825 = vpop.f32.mrf.mxu0
        %v826 = vadd.f32 0.0, %v825
        %v827 = vpop.f32.mrf.mxu0
        %828 = vmatprep.mubr.bf16.mxu0 0
        %829 = vmatmul.mubr.bf16.gmra.mxu0 %v730
        %v830 = vpop.f32.mrf.mxu0
        %v831 = vadd.f32 0.0, %v830
        %v832 = vpop.f32.mrf.mxu0
        %v833 = vpop.f32.mrf.mxu0
        %v834 = vadd.f32 0.0, %v833
        %v835 = vpop.f32.mrf.mxu0
        %836 = vmatprep.mubr.bf16.mxu0 0
        %837 = vmatmul.mubr.bf16.gmra.mxu0 %v733
        %v838 = vpop.f32.mrf.mxu0
        %v839 = vadd.f32 0.0, %v838
        %v840 = vpop.f32.mrf.mxu0
        %v841 = vpop.f32.mrf.mxu0
        %v842 = vadd.f32 0.0, %v841
        %v843 = vpop.f32.mrf.mxu0
        %844 = vmatprep.mubr.bf16.mxu0 0
        %845 = vmatmul.mubr.bf16.gmra.mxu0 %v736
        %v846 = vpop.f32.mrf.mxu0
        %v847 = vadd.f32 0.0, %v846
        %v848 = vpop.f32.mrf.mxu0
        %v849 = vpop.f32.mrf.mxu0
        %v850 = vadd.f32 0.0, %v849
        %v851 = vpop.f32.mrf.mxu0
        %852 = vmatprep.mubr.bf16.mxu0 0
        %853 = vmatmul.mubr.bf16.gmra.mxu0 %v739
        %v854 = vpop.f32.mrf.mxu0
        %v855 = vadd.f32 0.0, %v854
        %v856 = vpop.f32.mrf.mxu0
        %v857 = vpop.f32.mrf.mxu0
        %v858 = vadd.f32 0.0, %v857
        %v859 = vpop.f32.mrf.mxu0
        %860 = vmatprep.mubr.bf16.mxu0 0
        %861 = vmatmul.mubr.bf16.gmra.mxu0 %v742
        %v862 = vpop.f32.mrf.mxu0
        %v863 = vadd.f32 0.0, %v862
        %v864 = vpop.f32.mrf.mxu0
        %v865 = vpop.f32.mrf.mxu0
        %v866 = vadd.f32 0.0, %v865
        %v867 = vpop.f32.mrf.mxu0
        %868 = vmatprep.mubr.bf16.mxu0 0
        %869 = vmatmul.mubr.bf16.gmra.mxu0 %v745
        %v870 = vpop.f32.mrf.mxu0
        %v871 = vadd.f32 0.0, %v870
        %v872 = vpop.f32.mrf.mxu0
        %v873 = vpop.f32.mrf.mxu0
        %v874 = vadd.f32 0.0, %v873
        %v875 = vpop.f32.mrf.mxu0
        %876 = vmatprep.mubr.bf16.mxu0 0
        %877 = vmatmul.mubr.bf16.gmra.mxu0 %v748
        %v878 = vpop.f32.mrf.mxu0
        %v879 = vadd.f32 0.0, %v878
        %v880 = vpop.f32.mrf.mxu0
        %v881 = vpop.f32.mrf.mxu0
        %v882 = vadd.f32 0.0, %v881
        %v883 = vpop.f32.mrf.mxu0
        %884 = vmatprep.mubr.bf16.mxu0 0
        %885 = vmatmul.mubr.bf16.gmra.mxu0 %v751
        %v886 = vpop.f32.mrf.mxu0
        %v887 = vadd.f32 0.0, %v886
        %v888 = vpop.f32.mrf.mxu0
        %v889 = vpop.f32.mrf.mxu0
        %v890 = vadd.f32 0.0, %v889
        %v891 = vpop.f32.mrf.mxu0
        %892 = vmatprep.mubr.bf16.mxu0 0
        %893 = vmatmul.mubr.bf16.gmra.mxu0 %v754
        %v894 = vpop.f32.mrf.mxu0
        %v895 = vadd.f32 0.0, %v894
        %v896 = vpop.f32.mrf.mxu0
        %v897 = vpop.f32.mrf.mxu0
        %v898 = vadd.f32 0.0, %v897
        %v899 = vpop.f32.mrf.mxu0
        %900 = vmatprep.mubr.bf16.mxu0 0
        %901 = vmatmul.mubr.bf16.gmra.mxu0 %v757
        %v902 = vpop.f32.mrf.mxu0
        %v903 = vadd.f32 0.0, %v902
        %v904 = vpop.f32.mrf.mxu0
        %v905 = vpop.f32.mrf.mxu0
        %v906 = vadd.f32 0.0, %v905
        %v907 = vpop.f32.mrf.mxu0
        %908 = vmatprep.mubr.bf16.mxu0 0
        %909 = vmatmul.mubr.bf16.gmra.mxu0 %v760
        %v910 = vpop.f32.mrf.mxu0
        %v911 = vadd.f32 0.0, %v910
        %v912 = vpop.f32.mrf.mxu0
        %v913 = vpop.f32.mrf.mxu0
        %v914 = vadd.f32 0.0, %v913
        %v915 = vpop.f32.mrf.mxu0
        %916 = vmatprep.mubr.bf16.mxu0 0
        %917 = vmatmul.mubr.bf16.gmra.mxu0 %v763
        %v918 = vpop.f32.mrf.mxu0
        %v919 = vadd.f32 0.0, %v918
        %v920 = vpop.f32.mrf.mxu0
        %v921 = vpop.f32.mrf.mxu0
        %v922 = vadd.f32 0.0, %v921
        %v923 = vpop.f32.mrf.mxu0
        %924 = vmatprep.mubr.bf16.mxu0 0
        %925 = vmatmul.mubr.bf16.gmra.mxu0 %v766
        %v926 = vpop.f32.mrf.mxu0
        %v927 = vadd.f32 0.0, %v926
        %v928 = vpop.f32.mrf.mxu0
        %v929 = vpop.f32.mrf.mxu0
        %v930 = vadd.f32 0.0, %v929
        %v931 = vpop.f32.mrf.mxu0
        %932 = vdwg.mxu0
        %v965 = vunpack.c.l.b16 %v227
        %v966 = vunpack.c.l.b16 %v228
        %v967 = vunpack.c.l.b16 %v230
        %v968 = vunpack.c.l.b16 %v231
        %v969 = vunpack.c.l.b16 %v233
        %v970 = vunpack.c.l.b16 %v234
        %v971 = vunpack.c.l.b16 %v236
        %v972 = vunpack.c.l.b16 %v237
        %v973 = vunpack.c.l.b16 %v239
        %v974 = vunpack.c.l.b16 %v240
        %v975 = vunpack.c.l.b16 %v242
        %v976 = vunpack.c.l.b16 %v243
        %v977 = vunpack.c.l.b16 %v245
        %v978 = vunpack.c.l.b16 %v246
        %v979 = vunpack.c.l.b16 %v248
        %v980 = vunpack.c.l.b16 %v249
        %v981 = vunpack.c.l.b16 %v251
        %v982 = vunpack.c.l.b16 %v252
        %v983 = vunpack.c.l.b16 %v254
        %v984 = vunpack.c.l.b16 %v255
        %v985 = vunpack.c.l.b16 %v257
        %v986 = vunpack.c.l.b16 %v258
        %v987 = vunpack.c.l.b16 %v260
        %v988 = vunpack.c.l.b16 %v261
        %v989 = vunpack.c.l.b16 %v263
        %v990 = vunpack.c.l.b16 %v264
        %v991 = vunpack.c.l.b16 %v266
        %v992 = vunpack.c.l.b16 %v267
        %v993 = vunpack.c.l.b16 %v269
        %v994 = vunpack.c.l.b16 %v270
        %v995 = vunpack.c.l.b16 %v272
        %v996 = vunpack.c.l.b16 %v273
        %v997 = vpack.c.b16 %v966, %v965
        %v998 = vpack.c.b16 %v968, %v967
        %v999 = vpack.c.b16 %v970, %v969
        %v1000 = vpack.c.b16 %v972, %v971
        %v1001 = vpack.c.b16 %v974, %v973
        %v1002 = vpack.c.b16 %v976, %v975
        %v1003 = vpack.c.b16 %v978, %v977
        %v1004 = vpack.c.b16 %v980, %v979
        %v1005 = vpack.c.b16 %v982, %v981
        %v1006 = vpack.c.b16 %v984, %v983
        %v1007 = vpack.c.b16 %v986, %v985
        %v1008 = vpack.c.b16 %v988, %v987
        %v1009 = vpack.c.b16 %v990, %v989
        %v1010 = vpack.c.b16 %v992, %v991
        %v1011 = vpack.c.b16 %v994, %v993
        %v1012 = vpack.c.b16 %v996, %v995
        %v1014 = vsel %vm719, %v997, 0
        %v1017 = vsel %vm719, %v998, 0
        %v1020 = vsel %vm719, %v999, 0
        %v1023 = vsel %vm719, %v1000, 0
        %v1026 = vsel %vm719, %v1001, 0
        %v1029 = vsel %vm719, %v1002, 0
        %v1032 = vsel %vm719, %v1003, 0
        %v1035 = vsel %vm719, %v1004, 0
        %v1038 = vsel %vm719, %v1005, 0
        %v1041 = vsel %vm719, %v1006, 0
        %v1044 = vsel %vm719, %v1007, 0
        %v1047 = vsel %vm719, %v1008, 0
        %v1050 = vsel %vm719, %v1009, 0
        %v1053 = vsel %vm719, %v1010, 0
        %v1056 = vsel %vm719, %v1011, 0
        %v1059 = vsel %vm719, %v1012, 0
        %v1062 = vsel %vm768, %v281, 0
        %1064 = vmatprep.subr.bf16.mxu0 0
        %1065 = vmatpush1.bf16.msra.mxu0 0
        %1066 = vmatprep.subr.bf16.mxu0 0
        %1067 = vmatpush1.bf16.msra.mxu0 0
        %1068 = vmatprep.subr.bf16.mxu0 0
        %1069 = vmatpush1.bf16.msra.mxu0 0
        %1070 = vmatprep.subr.bf16.mxu0 0
        %1071 = vmatpush1.bf16.msra.mxu0 0
        %1072 = vmatprep.subr.bf16.mxu0 0
        %1073 = vmatpush1.bf16.msra.mxu0 0
        %1074 = vmatprep.subr.bf16.mxu0 0
        %1075 = vmatpush1.bf16.msra.mxu0 0
        %1076 = vmatprep.subr.bf16.mxu0 0
        %1077 = vmatpush1.bf16.msra.mxu0 0
        %1078 = vmatprep.subr.bf16.mxu0 0
        %1079 = vmatpush1.bf16.msra.mxu0 %v1062
        %1080 = vmatprep.subr.bf16.mxu0 0
        %1081 = vmatpush2.bf16.msra.mxu0 0
        %1082 = vmatprep.subr.bf16.mxu0 0
        %1083 = vmatpush2.bf16.msra.mxu0 0
        %1084 = vmatprep.subr.bf16.mxu0 0
        %1085 = vmatpush2.bf16.msra.mxu0 0
        %1086 = vmatprep.subr.bf16.mxu0 0
        %1087 = vmatpush2.bf16.msra.mxu0 0
        %1088 = vmatprep.subr.bf16.mxu0 0
        %1089 = vmatpush2.bf16.msra.mxu0 0
        %1090 = vmatprep.subr.bf16.mxu0 0
        %1091 = vmatpush2.bf16.msra.mxu0 0
        %1092 = vmatprep.subr.bf16.mxu0 0
        %1093 = vmatpush2.bf16.msra.mxu0 0
        %1094 = vmatprep.subr.bf16.mxu0 0
        %1095 = vmatpush2.bf16.msra.mxu0 0
        %1096 = vmatprep.mubr.bf16.mxu0 0
        %1097 = vmatmul.mubr.bf16.gmra.mxu0 %v1014
        %v1098 = vpop.f32.mrf.mxu0
        %v1099 = vadd.f32 %v807, %v1098
        %v1100 = vpop.f32.mrf.mxu0
        %v1101 = vpop.f32.mrf.mxu0
        %v1102 = vadd.f32 %v810, %v1101
        %v1103 = vpop.f32.mrf.mxu0
        %1104 = vmatprep.mubr.bf16.mxu0 0
        %1105 = vmatmul.mubr.bf16.gmra.mxu0 %v1017
        %v1106 = vpop.f32.mrf.mxu0
        %v1107 = vadd.f32 %v815, %v1106
        %v1108 = vpop.f32.mrf.mxu0
        %v1109 = vpop.f32.mrf.mxu0
        %v1110 = vadd.f32 %v818, %v1109
        %v1111 = vpop.f32.mrf.mxu0
        %1112 = vmatprep.mubr.bf16.mxu0 0
        %1113 = vmatmul.mubr.bf16.gmra.mxu0 %v1020
        %v1114 = vpop.f32.mrf.mxu0
        %v1115 = vadd.f32 %v823, %v1114
        %v1116 = vpop.f32.mrf.mxu0
        %v1117 = vpop.f32.mrf.mxu0
        %v1118 = vadd.f32 %v826, %v1117
        %v1119 = vpop.f32.mrf.mxu0
        %1120 = vmatprep.mubr.bf16.mxu0 0
        %1121 = vmatmul.mubr.bf16.gmra.mxu0 %v1023
        %v1122 = vpop.f32.mrf.mxu0
        %v1123 = vadd.f32 %v831, %v1122
        %v1124 = vpop.f32.mrf.mxu0
        %v1125 = vpop.f32.mrf.mxu0
        %v1126 = vadd.f32 %v834, %v1125
        %v1127 = vpop.f32.mrf.mxu0
        %1128 = vmatprep.mubr.bf16.mxu0 0
        %1129 = vmatmul.mubr.bf16.gmra.mxu0 %v1026
        %v1130 = vpop.f32.mrf.mxu0
        %v1131 = vadd.f32 %v839, %v1130
        %v1132 = vpop.f32.mrf.mxu0
        %v1133 = vpop.f32.mrf.mxu0
        %v1134 = vadd.f32 %v842, %v1133
        %v1135 = vpop.f32.mrf.mxu0
        %1136 = vmatprep.mubr.bf16.mxu0 0
        %1137 = vmatmul.mubr.bf16.gmra.mxu0 %v1029
        %v1138 = vpop.f32.mrf.mxu0
        %v1139 = vadd.f32 %v847, %v1138
        %v1140 = vpop.f32.mrf.mxu0
        %v1141 = vpop.f32.mrf.mxu0
        %v1142 = vadd.f32 %v850, %v1141
        %v1143 = vpop.f32.mrf.mxu0
        %1144 = vmatprep.mubr.bf16.mxu0 0
        %1145 = vmatmul.mubr.bf16.gmra.mxu0 %v1032
        %v1146 = vpop.f32.mrf.mxu0
        %v1147 = vadd.f32 %v855, %v1146
        %v1148 = vpop.f32.mrf.mxu0
        %v1149 = vpop.f32.mrf.mxu0
        %v1150 = vadd.f32 %v858, %v1149
        %v1151 = vpop.f32.mrf.mxu0
        %1152 = vmatprep.mubr.bf16.mxu0 0
        %1153 = vmatmul.mubr.bf16.gmra.mxu0 %v1035
        %v1154 = vpop.f32.mrf.mxu0
        %v1155 = vadd.f32 %v863, %v1154
        %v1156 = vpop.f32.mrf.mxu0
        %v1157 = vpop.f32.mrf.mxu0
        %v1158 = vadd.f32 %v866, %v1157
        %v1159 = vpop.f32.mrf.mxu0
        %1160 = vmatprep.mubr.bf16.mxu0 0
        %1161 = vmatmul.mubr.bf16.gmra.mxu0 %v1038
        %v1162 = vpop.f32.mrf.mxu0
        %v1163 = vadd.f32 %v871, %v1162
        %v1164 = vpop.f32.mrf.mxu0
        %v1165 = vpop.f32.mrf.mxu0
        %v1166 = vadd.f32 %v874, %v1165
        %v1167 = vpop.f32.mrf.mxu0
        %1168 = vmatprep.mubr.bf16.mxu0 0
        %1169 = vmatmul.mubr.bf16.gmra.mxu0 %v1041
        %v1170 = vpop.f32.mrf.mxu0
        %v1171 = vadd.f32 %v879, %v1170
        %v1172 = vpop.f32.mrf.mxu0
        %v1173 = vpop.f32.mrf.mxu0
        %v1174 = vadd.f32 %v882, %v1173
        %v1175 = vpop.f32.mrf.mxu0
        %1176 = vmatprep.mubr.bf16.mxu0 0
        %1177 = vmatmul.mubr.bf16.gmra.mxu0 %v1044
        %v1178 = vpop.f32.mrf.mxu0
        %v1179 = vadd.f32 %v887, %v1178
        %v1180 = vpop.f32.mrf.mxu0
        %v1181 = vpop.f32.mrf.mxu0
        %v1182 = vadd.f32 %v890, %v1181
        %v1183 = vpop.f32.mrf.mxu0
        %1184 = vmatprep.mubr.bf16.mxu0 0
        %1185 = vmatmul.mubr.bf16.gmra.mxu0 %v1047
        %v1186 = vpop.f32.mrf.mxu0
        %v1187 = vadd.f32 %v895, %v1186
        %v1188 = vpop.f32.mrf.mxu0
        %v1189 = vpop.f32.mrf.mxu0
        %v1190 = vadd.f32 %v898, %v1189
        %v1191 = vpop.f32.mrf.mxu0
        %1192 = vmatprep.mubr.bf16.mxu0 0
        %1193 = vmatmul.mubr.bf16.gmra.mxu0 %v1050
        %v1194 = vpop.f32.mrf.mxu0
        %v1195 = vadd.f32 %v903, %v1194
        %v1196 = vpop.f32.mrf.mxu0
        %v1197 = vpop.f32.mrf.mxu0
        %v1198 = vadd.f32 %v906, %v1197
        %v1199 = vpop.f32.mrf.mxu0
        %1200 = vmatprep.mubr.bf16.mxu0 0
        %1201 = vmatmul.mubr.bf16.gmra.mxu0 %v1053
        %v1202 = vpop.f32.mrf.mxu0
        %v1203 = vadd.f32 %v911, %v1202
        %v1204 = vpop.f32.mrf.mxu0
        %v1205 = vpop.f32.mrf.mxu0
        %v1206 = vadd.f32 %v914, %v1205
        %v1207 = vpop.f32.mrf.mxu0
        %1208 = vmatprep.mubr.bf16.mxu0 0
        %1209 = vmatmul.mubr.bf16.gmra.mxu0 %v1056
        %v1210 = vpop.f32.mrf.mxu0
        %v1211 = vadd.f32 %v919, %v1210
        %v1212 = vpop.f32.mrf.mxu0
        %v1213 = vpop.f32.mrf.mxu0
        %v1214 = vadd.f32 %v922, %v1213
        %v1215 = vpop.f32.mrf.mxu0
        %1216 = vmatprep.mubr.bf16.mxu0 0
        %1217 = vmatmul.mubr.bf16.gmra.mxu0 %v1059
        %v1218 = vpop.f32.mrf.mxu0
        %v1219 = vadd.f32 %v927, %v1218
        %v1220 = vpop.f32.mrf.mxu0
        %v1221 = vpop.f32.mrf.mxu0
        %v1222 = vadd.f32 %v930, %v1221
        %v1223 = vpop.f32.mrf.mxu0
        %1224 = vdwg.mxu0
        %vm1241 = vcmask 1042432
        %vm1242 = vcmask 1046532
        %vm1243 = vmor %vm1241, %vm1242
        %v1244 = vrot.slane %v227, 5
        %v1245 = vrot.slane %v1244, 4
        %v1246 = vrot.slane %v228, 5
        %v1247 = vsel %vm1243, %v1245, %v1246
        %v1248 = vrot.slane %v1246, 4
        %v1249 = vrot.slane %v229, 5
        %v1250 = vsel %vm1243, %v1248, %v1249
        %v1251 = vrot.slane %v230, 5
        %v1252 = vrot.slane %v1251, 4
        %v1253 = vrot.slane %v231, 5
        %v1254 = vsel %vm1243, %v1252, %v1253
        %v1255 = vrot.slane %v1253, 4
        %v1256 = vrot.slane %v232, 5
        %v1257 = vsel %vm1243, %v1255, %v1256
        %v1258 = vrot.slane %v233, 5
        %v1259 = vrot.slane %v1258, 4
        %v1260 = vrot.slane %v234, 5
        %v1261 = vsel %vm1243, %v1259, %v1260
        %v1262 = vrot.slane %v1260, 4
        %v1263 = vrot.slane %v235, 5
        %v1264 = vsel %vm1243, %v1262, %v1263
        %v1265 = vrot.slane %v236, 5
        %v1266 = vrot.slane %v1265, 4
        %v1267 = vrot.slane %v237, 5
        %v1268 = vsel %vm1243, %v1266, %v1267
        %v1269 = vrot.slane %v1267, 4
        %v1270 = vrot.slane %v238, 5
        %v1271 = vsel %vm1243, %v1269, %v1270
        %v1272 = vrot.slane %v239, 5
        %v1273 = vrot.slane %v1272, 4
        %v1274 = vrot.slane %v240, 5
        %v1275 = vsel %vm1243, %v1273, %v1274
        %v1276 = vrot.slane %v1274, 4
        %v1277 = vrot.slane %v241, 5
        %v1278 = vsel %vm1243, %v1276, %v1277
        %v1279 = vrot.slane %v242, 5
        %v1280 = vrot.slane %v1279, 4
        %v1281 = vrot.slane %v243, 5
        %v1282 = vsel %vm1243, %v1280, %v1281
        %v1283 = vrot.slane %v1281, 4
        %v1284 = vrot.slane %v244, 5
        %v1285 = vsel %vm1243, %v1283, %v1284
        %v1286 = vrot.slane %v245, 5
        %v1287 = vrot.slane %v1286, 4
        %v1288 = vrot.slane %v246, 5
        %v1289 = vsel %vm1243, %v1287, %v1288
        %v1290 = vrot.slane %v1288, 4
        %v1291 = vrot.slane %v247, 5
        %v1292 = vsel %vm1243, %v1290, %v1291
        %v1293 = vrot.slane %v248, 5
        %v1294 = vrot.slane %v1293, 4
        %v1295 = vrot.slane %v249, 5
        %v1296 = vsel %vm1243, %v1294, %v1295
        %v1297 = vrot.slane %v1295, 4
        %v1298 = vrot.slane %v250, 5
        %v1299 = vsel %vm1243, %v1297, %v1298
        %v1300 = vrot.slane %v251, 5
        %v1301 = vrot.slane %v1300, 4
        %v1302 = vrot.slane %v252, 5
        %v1303 = vsel %vm1243, %v1301, %v1302
        %v1304 = vrot.slane %v1302, 4
        %v1305 = vrot.slane %v253, 5
        %v1306 = vsel %vm1243, %v1304, %v1305
        %v1307 = vrot.slane %v254, 5
        %v1308 = vrot.slane %v1307, 4
        %v1309 = vrot.slane %v255, 5
        %v1310 = vsel %vm1243, %v1308, %v1309
        %v1311 = vrot.slane %v1309, 4
        %v1312 = vrot.slane %v256, 5
        %v1313 = vsel %vm1243, %v1311, %v1312
        %v1314 = vrot.slane %v257, 5
        %v1315 = vrot.slane %v1314, 4
        %v1316 = vrot.slane %v258, 5
        %v1317 = vsel %vm1243, %v1315, %v1316
        %v1318 = vrot.slane %v1316, 4
        %v1319 = vrot.slane %v259, 5
        %v1320 = vsel %vm1243, %v1318, %v1319
        %v1321 = vrot.slane %v260, 5
        %v1322 = vrot.slane %v1321, 4
        %v1323 = vrot.slane %v261, 5
        %v1324 = vsel %vm1243, %v1322, %v1323
        %v1325 = vrot.slane %v1323, 4
        %v1326 = vrot.slane %v262, 5
        %v1327 = vsel %vm1243, %v1325, %v1326
        %v1328 = vrot.slane %v263, 5
        %v1329 = vrot.slane %v1328, 4
        %v1330 = vrot.slane %v264, 5
        %v1331 = vsel %vm1243, %v1329, %v1330
        %v1332 = vrot.slane %v1330, 4
        %v1333 = vrot.slane %v265, 5
        %v1334 = vsel %vm1243, %v1332, %v1333
        %v1335 = vrot.slane %v266, 5
        %v1336 = vrot.slane %v1335, 4
        %v1337 = vrot.slane %v267, 5
        %v1338 = vsel %vm1243, %v1336, %v1337
        %v1339 = vrot.slane %v1337, 4
        %v1340 = vrot.slane %v268, 5
        %v1341 = vsel %vm1243, %v1339, %v1340
        %v1342 = vrot.slane %v269, 5
        %v1343 = vrot.slane %v1342, 4
        %v1344 = vrot.slane %v270, 5
        %v1345 = vsel %vm1243, %v1343, %v1344
        %v1346 = vrot.slane %v1344, 4
        %v1347 = vrot.slane %v271, 5
        %v1348 = vsel %vm1243, %v1346, %v1347
        %v1349 = vrot.slane %v272, 5
        %v1350 = vrot.slane %v1349, 4
        %v1351 = vrot.slane %v273, 5
        %v1352 = vsel %vm1243, %v1350, %v1351
        %v1353 = vrot.slane %v1351, 4
        %v1354 = vrot.slane %v274, 5
        %v1355 = vsel %vm1243, %v1353, %v1354
        %s1356 = scalar_lea.vmem %s1, 4
        %v1357 = vld [vmem:[%s1356] sm:$0x3]
        %v1358 = vunpack.c.l.b16 %v1247
        %v1359 = vunpack.c.l.b16 %v1250
        %v1360 = vunpack.c.l.b16 %v1254
        %v1361 = vunpack.c.l.b16 %v1257
        %v1362 = vunpack.c.l.b16 %v1261
        %v1363 = vunpack.c.l.b16 %v1264
        %v1364 = vunpack.c.l.b16 %v1268
        %v1365 = vunpack.c.l.b16 %v1271
        %v1366 = vunpack.c.l.b16 %v1275
        %v1367 = vunpack.c.l.b16 %v1278
        %v1368 = vunpack.c.l.b16 %v1282
        %v1369 = vunpack.c.l.b16 %v1285
        %v1370 = vunpack.c.l.b16 %v1289
        %v1371 = vunpack.c.l.b16 %v1292
        %v1372 = vunpack.c.l.b16 %v1296
        %v1373 = vunpack.c.l.b16 %v1299
        %v1374 = vunpack.c.l.b16 %v1303
        %v1375 = vunpack.c.l.b16 %v1306
        %v1376 = vunpack.c.l.b16 %v1310
        %v1377 = vunpack.c.l.b16 %v1313
        %v1378 = vunpack.c.l.b16 %v1317
        %v1379 = vunpack.c.l.b16 %v1320
        %v1380 = vunpack.c.l.b16 %v1324
        %v1381 = vunpack.c.l.b16 %v1327
        %v1382 = vunpack.c.l.b16 %v1331
        %v1383 = vunpack.c.l.b16 %v1334
        %v1384 = vunpack.c.l.b16 %v1338
        %v1385 = vunpack.c.l.b16 %v1341
        %v1386 = vunpack.c.l.b16 %v1345
        %v1387 = vunpack.c.l.b16 %v1348
        %v1388 = vunpack.c.l.b16 %v1352
        %v1389 = vunpack.c.l.b16 %v1355
        %v1390 = vpack.c.b16 %v1359, %v1358
        %v1391 = vpack.c.b16 %v1361, %v1360
        %v1392 = vpack.c.b16 %v1363, %v1362
        %v1393 = vpack.c.b16 %v1365, %v1364
        %v1394 = vpack.c.b16 %v1367, %v1366
        %v1395 = vpack.c.b16 %v1369, %v1368
        %v1396 = vpack.c.b16 %v1371, %v1370
        %v1397 = vpack.c.b16 %v1373, %v1372
        %v1398 = vpack.c.b16 %v1375, %v1374
        %v1399 = vpack.c.b16 %v1377, %v1376
        %v1400 = vpack.c.b16 %v1379, %v1378
        %v1401 = vpack.c.b16 %v1381, %v1380
        %v1402 = vpack.c.b16 %v1383, %v1382
        %v1403 = vpack.c.b16 %v1385, %v1384
        %v1404 = vpack.c.b16 %v1387, %v1386
        %v1405 = vpack.c.b16 %v1389, %v1388
        %v1407 = vsel %vm719, %v1390, 0
        %v1410 = vsel %vm719, %v1391, 0
        %v1413 = vsel %vm719, %v1392, 0
        %v1416 = vsel %vm719, %v1393, 0
        %v1419 = vsel %vm719, %v1394, 0
        %v1422 = vsel %vm719, %v1395, 0
        %v1425 = vsel %vm719, %v1396, 0
        %v1428 = vsel %vm719, %v1397, 0
        %v1431 = vsel %vm719, %v1398, 0
        %v1434 = vsel %vm719, %v1399, 0
        %v1437 = vsel %vm719, %v1400, 0
        %v1440 = vsel %vm719, %v1401, 0
        %v1443 = vsel %vm719, %v1402, 0
        %v1446 = vsel %vm719, %v1403, 0
        %v1449 = vsel %vm719, %v1404, 0
        %v1452 = vsel %vm719, %v1405, 0
        %v1455 = vsel %vm768, %v1357, 0
        %1457 = vmatprep.subr.bf16.mxu0 0
        %1458 = vmatpush1.bf16.msra.mxu0 0
        %1459 = vmatprep.subr.bf16.mxu0 0
        %1460 = vmatpush1.bf16.msra.mxu0 0
        %1461 = vmatprep.subr.bf16.mxu0 0
        %1462 = vmatpush1.bf16.msra.mxu0 0
        %1463 = vmatprep.subr.bf16.mxu0 0
        %1464 = vmatpush1.bf16.msra.mxu0 0
        %1465 = vmatprep.subr.bf16.mxu0 0
        %1466 = vmatpush1.bf16.msra.mxu0 0
        %1467 = vmatprep.subr.bf16.mxu0 0
        %1468 = vmatpush1.bf16.msra.mxu0 0
        %1469 = vmatprep.subr.bf16.mxu0 0
        %1470 = vmatpush1.bf16.msra.mxu0 0
        %1471 = vmatprep.subr.bf16.mxu0 0
        %1472 = vmatpush1.bf16.msra.mxu0 %v1455
        %1473 = vmatprep.subr.bf16.mxu0 0
        %1474 = vmatpush2.bf16.msra.mxu0 0
        %1475 = vmatprep.subr.bf16.mxu0 0
        %1476 = vmatpush2.bf16.msra.mxu0 0
        %1477 = vmatprep.subr.bf16.mxu0 0
        %1478 = vmatpush2.bf16.msra.mxu0 0
        %1479 = vmatprep.subr.bf16.mxu0 0
        %1480 = vmatpush2.bf16.msra.mxu0 0
        %1481 = vmatprep.subr.bf16.mxu0 0
        %1482 = vmatpush2.bf16.msra.mxu0 0
        %1483 = vmatprep.subr.bf16.mxu0 0
        %1484 = vmatpush2.bf16.msra.mxu0 0
        %1485 = vmatprep.subr.bf16.mxu0 0
        %1486 = vmatpush2.bf16.msra.mxu0 0
        %1487 = vmatprep.subr.bf16.mxu0 0
        %1488 = vmatpush2.bf16.msra.mxu0 0
        %1489 = vmatprep.mubr.bf16.mxu0 0
        %1490 = vmatmul.mubr.bf16.gmra.mxu0 %v1407
        %v1491 = vpop.f32.mrf.mxu0
        %v1492 = vadd.f32 0.0, %v1491
        %v1493 = vpop.f32.mrf.mxu0
        %v1494 = vpop.f32.mrf.mxu0
        %v1495 = vadd.f32 0.0, %v1494
        %v1496 = vpop.f32.mrf.mxu0
        %1497 = vmatprep.mubr.bf16.mxu0 0
        %1498 = vmatmul.mubr.bf16.gmra.mxu0 %v1410
        %v1499 = vpop.f32.mrf.mxu0
        %v1500 = vadd.f32 0.0, %v1499
        %v1501 = vpop.f32.mrf.mxu0
        %v1502 = vpop.f32.mrf.mxu0
        %v1503 = vadd.f32 0.0, %v1502
        %v1504 = vpop.f32.mrf.mxu0
        %1505 = vmatprep.mubr.bf16.mxu0 0
        %1506 = vmatmul.mubr.bf16.gmra.mxu0 %v1413
        %v1507 = vpop.f32.mrf.mxu0
        %v1508 = vadd.f32 0.0, %v1507
        %v1509 = vpop.f32.mrf.mxu0
        %v1510 = vpop.f32.mrf.mxu0
        %v1511 = vadd.f32 0.0, %v1510
        %v1512 = vpop.f32.mrf.mxu0
        %1513 = vmatprep.mubr.bf16.mxu0 0
        %1514 = vmatmul.mubr.bf16.gmra.mxu0 %v1416
        %v1515 = vpop.f32.mrf.mxu0
        %v1516 = vadd.f32 0.0, %v1515
        %v1517 = vpop.f32.mrf.mxu0
        %v1518 = vpop.f32.mrf.mxu0
        %v1519 = vadd.f32 0.0, %v1518
        %v1520 = vpop.f32.mrf.mxu0
        %1521 = vmatprep.mubr.bf16.mxu0 0
        %1522 = vmatmul.mubr.bf16.gmra.mxu0 %v1419
        %v1523 = vpop.f32.mrf.mxu0
        %v1524 = vadd.f32 0.0, %v1523
        %v1525 = vpop.f32.mrf.mxu0
        %v1526 = vpop.f32.mrf.mxu0
        %v1527 = vadd.f32 0.0, %v1526
        %v1528 = vpop.f32.mrf.mxu0
        %1529 = vmatprep.mubr.bf16.mxu0 0
        %1530 = vmatmul.mubr.bf16.gmra.mxu0 %v1422
        %v1531 = vpop.f32.mrf.mxu0
        %v1532 = vadd.f32 0.0, %v1531
        %v1533 = vpop.f32.mrf.mxu0
        %v1534 = vpop.f32.mrf.mxu0
        %v1535 = vadd.f32 0.0, %v1534
        %v1536 = vpop.f32.mrf.mxu0
        %1537 = vmatprep.mubr.bf16.mxu0 0
        %1538 = vmatmul.mubr.bf16.gmra.mxu0 %v1425
        %v1539 = vpop.f32.mrf.mxu0
        %v1540 = vadd.f32 0.0, %v1539
        %v1541 = vpop.f32.mrf.mxu0
        %v1542 = vpop.f32.mrf.mxu0
        %v1543 = vadd.f32 0.0, %v1542
        %v1544 = vpop.f32.mrf.mxu0
        %1545 = vmatprep.mubr.bf16.mxu0 0
        %1546 = vmatmul.mubr.bf16.gmra.mxu0 %v1428
        %v1547 = vpop.f32.mrf.mxu0
        %v1548 = vadd.f32 0.0, %v1547
        %v1549 = vpop.f32.mrf.mxu0
        %v1550 = vpop.f32.mrf.mxu0
        %v1551 = vadd.f32 0.0, %v1550
        %v1552 = vpop.f32.mrf.mxu0
        %1553 = vmatprep.mubr.bf16.mxu0 0
        %1554 = vmatmul.mubr.bf16.gmra.mxu0 %v1431
        %v1555 = vpop.f32.mrf.mxu0
        %v1556 = vadd.f32 0.0, %v1555
        %v1557 = vpop.f32.mrf.mxu0
        %v1558 = vpop.f32.mrf.mxu0
        %v1559 = vadd.f32 0.0, %v1558
        %v1560 = vpop.f32.mrf.mxu0
        %1561 = vmatprep.mubr.bf16.mxu0 0
        %1562 = vmatmul.mubr.bf16.gmra.mxu0 %v1434
        %v1563 = vpop.f32.mrf.mxu0
        %v1564 = vadd.f32 0.0, %v1563
        %v1565 = vpop.f32.mrf.mxu0
        %v1566 = vpop.f32.mrf.mxu0
        %v1567 = vadd.f32 0.0, %v1566
        %v1568 = vpop.f32.mrf.mxu0
        %1569 = vmatprep.mubr.bf16.mxu0 0
        %1570 = vmatmul.mubr.bf16.gmra.mxu0 %v1437
        %v1571 = vpop.f32.mrf.mxu0
        %v1572 = vadd.f32 0.0, %v1571
        %v1573 = vpop.f32.mrf.mxu0
        %v1574 = vpop.f32.mrf.mxu0
        %v1575 = vadd.f32 0.0, %v1574
        %v1576 = vpop.f32.mrf.mxu0
        %1577 = vmatprep.mubr.bf16.mxu0 0
        %1578 = vmatmul.mubr.bf16.gmra.mxu0 %v1440
        %v1579 = vpop.f32.mrf.mxu0
        %v1580 = vadd.f32 0.0, %v1579
        %v1581 = vpop.f32.mrf.mxu0
        %v1582 = vpop.f32.mrf.mxu0
        %v1583 = vadd.f32 0.0, %v1582
        %v1584 = vpop.f32.mrf.mxu0
        %1585 = vmatprep.mubr.bf16.mxu0 0
        %1586 = vmatmul.mubr.bf16.gmra.mxu0 %v1443
        %v1587 = vpop.f32.mrf.mxu0
        %v1588 = vadd.f32 0.0, %v1587
        %v1589 = vpop.f32.mrf.mxu0
        %v1590 = vpop.f32.mrf.mxu0
        %v1591 = vadd.f32 0.0, %v1590
        %v1592 = vpop.f32.mrf.mxu0
        %1593 = vmatprep.mubr.bf16.mxu0 0
        %1594 = vmatmul.mubr.bf16.gmra.mxu0 %v1446
        %v1595 = vpop.f32.mrf.mxu0
        %v1596 = vadd.f32 0.0, %v1595
        %v1597 = vpop.f32.mrf.mxu0
        %v1598 = vpop.f32.mrf.mxu0
        %v1599 = vadd.f32 0.0, %v1598
        %v1600 = vpop.f32.mrf.mxu0
        %1601 = vmatprep.mubr.bf16.mxu0 0
        %1602 = vmatmul.mubr.bf16.gmra.mxu0 %v1449
        %v1603 = vpop.f32.mrf.mxu0
        %v1604 = vadd.f32 0.0, %v1603
        %v1605 = vpop.f32.mrf.mxu0
        %v1606 = vpop.f32.mrf.mxu0
        %v1607 = vadd.f32 0.0, %v1606
        %v1608 = vpop.f32.mrf.mxu0
        %1609 = vmatprep.mubr.bf16.mxu0 0
        %1610 = vmatmul.mubr.bf16.gmra.mxu0 %v1452
        %v1611 = vpop.f32.mrf.mxu0
        %v1612 = vadd.f32 0.0, %v1611
        %v1613 = vpop.f32.mrf.mxu0
        %v1614 = vpop.f32.mrf.mxu0
        %v1615 = vadd.f32 0.0, %v1614
        %v1616 = vpop.f32.mrf.mxu0
        %1617 = vdwg.mxu0
        %v1618 = vadd.f32 %v1099, %v1492
        %v1619 = vadd.f32 %v1102, %v1495
        %v1620 = vadd.f32 %v1107, %v1500
        %v1621 = vadd.f32 %v1110, %v1503
        %v1622 = vadd.f32 %v1115, %v1508
        %v1623 = vadd.f32 %v1118, %v1511
        %v1624 = vadd.f32 %v1123, %v1516
        %v1625 = vadd.f32 %v1126, %v1519
        %v1626 = vadd.f32 %v1131, %v1524
        %v1627 = vadd.f32 %v1134, %v1527
        %v1628 = vadd.f32 %v1139, %v1532
        %v1629 = vadd.f32 %v1142, %v1535
        %v1630 = vadd.f32 %v1147, %v1540
        %v1631 = vadd.f32 %v1150, %v1543
        %v1632 = vadd.f32 %v1155, %v1548
        %v1633 = vadd.f32 %v1158, %v1551
        %v1634 = vadd.f32 %v1163, %v1556
        %v1635 = vadd.f32 %v1166, %v1559
        %v1636 = vadd.f32 %v1171, %v1564
        %v1637 = vadd.f32 %v1174, %v1567
        %v1638 = vadd.f32 %v1179, %v1572
        %v1639 = vadd.f32 %v1182, %v1575
        %v1640 = vadd.f32 %v1187, %v1580
        %v1641 = vadd.f32 %v1190, %v1583
        %v1642 = vadd.f32 %v1195, %v1588
        %v1643 = vadd.f32 %v1198, %v1591
        %v1644 = vadd.f32 %v1203, %v1596
        %v1645 = vadd.f32 %v1206, %v1599
        %v1646 = vadd.f32 %v1211, %v1604
        %v1647 = vadd.f32 %v1214, %v1607
        %v1648 = vadd.f32 %v1219, %v1612
        %v1649 = vadd.f32 %v1222, %v1615
        %s1650 = scalar_lea.vmem %s1, 6
        %v1651 = vld [vmem:[%s1650] sm:$0x3]
        %v1654 = vunpack.c.l.b16 %v275
        %v1655 = vunpack.c.l.b16 %v276
        %v1656 = vpack.c.b16 %v1655, %v1654
        %v1658 = vsel %vm719, %v1656, 0
        %v1661 = vsel %vm768, %v1651, 0
        %1663 = vmatprep.subr.bf16.mxu0 0
        %1664 = vmatpush1.bf16.msra.mxu0 0
        %1665 = vmatprep.subr.bf16.mxu0 0
        %1666 = vmatpush1.bf16.msra.mxu0 0
        %1667 = vmatprep.subr.bf16.mxu0 0
        %1668 = vmatpush1.bf16.msra.mxu0 0
        %1669 = vmatprep.subr.bf16.mxu0 0
        %1670 = vmatpush1.bf16.msra.mxu0 0
        %1671 = vmatprep.subr.bf16.mxu0 0
        %1672 = vmatpush1.bf16.msra.mxu0 0
        %1673 = vmatprep.subr.bf16.mxu0 0
        %1674 = vmatpush1.bf16.msra.mxu0 0
        %1675 = vmatprep.subr.bf16.mxu0 0
        %1676 = vmatpush1.bf16.msra.mxu0 0
        %1677 = vmatprep.subr.bf16.mxu0 0
        %1678 = vmatpush1.bf16.msra.mxu0 %v1661
        %1679 = vmatprep.subr.bf16.mxu0 0
        %1680 = vmatpush2.bf16.msra.mxu0 0
        %1681 = vmatprep.subr.bf16.mxu0 0
        %1682 = vmatpush2.bf16.msra.mxu0 0
        %1683 = vmatprep.subr.bf16.mxu0 0
        %1684 = vmatpush2.bf16.msra.mxu0 0
        %1685 = vmatprep.subr.bf16.mxu0 0
        %1686 = vmatpush2.bf16.msra.mxu0 0
        %1687 = vmatprep.subr.bf16.mxu0 0
        %1688 = vmatpush2.bf16.msra.mxu0 0
        %1689 = vmatprep.subr.bf16.mxu0 0
        %1690 = vmatpush2.bf16.msra.mxu0 0
        %1691 = vmatprep.subr.bf16.mxu0 0
        %1692 = vmatpush2.bf16.msra.mxu0 0
        %1693 = vmatprep.subr.bf16.mxu0 0
        %1694 = vmatpush2.bf16.msra.mxu0 0
        %1695 = vmatprep.mubr.bf16.mxu0 0
        %1696 = vmatmul.mubr.bf16.gmra.mxu0 %v1017
        %v1697 = vpop.f32.mrf.mxu0
        %v1698 = vadd.f32 0.0, %v1697
        %v1699 = vpop.f32.mrf.mxu0
        %v1700 = vpop.f32.mrf.mxu0
        %v1701 = vadd.f32 0.0, %v1700
        %v1702 = vpop.f32.mrf.mxu0
        %1703 = vmatprep.mubr.bf16.mxu0 0
        %1704 = vmatmul.mubr.bf16.gmra.mxu0 %v1020
        %v1705 = vpop.f32.mrf.mxu0
        %v1706 = vadd.f32 0.0, %v1705
        %v1707 = vpop.f32.mrf.mxu0
        %v1708 = vpop.f32.mrf.mxu0
        %v1709 = vadd.f32 0.0, %v1708
        %v1710 = vpop.f32.mrf.mxu0
        %1711 = vmatprep.mubr.bf16.mxu0 0
        %1712 = vmatmul.mubr.bf16.gmra.mxu0 %v1023
        %v1713 = vpop.f32.mrf.mxu0
        %v1714 = vadd.f32 0.0, %v1713
        %v1715 = vpop.f32.mrf.mxu0
        %v1716 = vpop.f32.mrf.mxu0
        %v1717 = vadd.f32 0.0, %v1716
        %v1718 = vpop.f32.mrf.mxu0
        %1719 = vmatprep.mubr.bf16.mxu0 0
        %1720 = vmatmul.mubr.bf16.gmra.mxu0 %v1026
        %v1721 = vpop.f32.mrf.mxu0
        %v1722 = vadd.f32 0.0, %v1721
        %v1723 = vpop.f32.mrf.mxu0
        %v1724 = vpop.f32.mrf.mxu0
        %v1725 = vadd.f32 0.0, %v1724
        %v1726 = vpop.f32.mrf.mxu0
        %1727 = vmatprep.mubr.bf16.mxu0 0
        %1728 = vmatmul.mubr.bf16.gmra.mxu0 %v1029
        %v1729 = vpop.f32.mrf.mxu0
        %v1730 = vadd.f32 0.0, %v1729
        %v1731 = vpop.f32.mrf.mxu0
        %v1732 = vpop.f32.mrf.mxu0
        %v1733 = vadd.f32 0.0, %v1732
        %v1734 = vpop.f32.mrf.mxu0
        %1735 = vmatprep.mubr.bf16.mxu0 0
        %1736 = vmatmul.mubr.bf16.gmra.mxu0 %v1032
        %v1737 = vpop.f32.mrf.mxu0
        %v1738 = vadd.f32 0.0, %v1737
        %v1739 = vpop.f32.mrf.mxu0
        %v1740 = vpop.f32.mrf.mxu0
        %v1741 = vadd.f32 0.0, %v1740
        %v1742 = vpop.f32.mrf.mxu0
        %1743 = vmatprep.mubr.bf16.mxu0 0
        %1744 = vmatmul.mubr.bf16.gmra.mxu0 %v1035
        %v1745 = vpop.f32.mrf.mxu0
        %v1746 = vadd.f32 0.0, %v1745
        %v1747 = vpop.f32.mrf.mxu0
        %v1748 = vpop.f32.mrf.mxu0
        %v1749 = vadd.f32 0.0, %v1748
        %v1750 = vpop.f32.mrf.mxu0
        %1751 = vmatprep.mubr.bf16.mxu0 0
        %1752 = vmatmul.mubr.bf16.gmra.mxu0 %v1038
        %v1753 = vpop.f32.mrf.mxu0
        %v1754 = vadd.f32 0.0, %v1753
        %v1755 = vpop.f32.mrf.mxu0
        %v1756 = vpop.f32.mrf.mxu0
        %v1757 = vadd.f32 0.0, %v1756
        %v1758 = vpop.f32.mrf.mxu0
        %1759 = vmatprep.mubr.bf16.mxu0 0
        %1760 = vmatmul.mubr.bf16.gmra.mxu0 %v1041
        %v1761 = vpop.f32.mrf.mxu0
        %v1762 = vadd.f32 0.0, %v1761
        %v1763 = vpop.f32.mrf.mxu0
        %v1764 = vpop.f32.mrf.mxu0
        %v1765 = vadd.f32 0.0, %v1764
        %v1766 = vpop.f32.mrf.mxu0
        %1767 = vmatprep.mubr.bf16.mxu0 0
        %1768 = vmatmul.mubr.bf16.gmra.mxu0 %v1044
        %v1769 = vpop.f32.mrf.mxu0
        %v1770 = vadd.f32 0.0, %v1769
        %v1771 = vpop.f32.mrf.mxu0
        %v1772 = vpop.f32.mrf.mxu0
        %v1773 = vadd.f32 0.0, %v1772
        %v1774 = vpop.f32.mrf.mxu0
        %1775 = vmatprep.mubr.bf16.mxu0 0
        %1776 = vmatmul.mubr.bf16.gmra.mxu0 %v1047
        %v1777 = vpop.f32.mrf.mxu0
        %v1778 = vadd.f32 0.0, %v1777
        %v1779 = vpop.f32.mrf.mxu0
        %v1780 = vpop.f32.mrf.mxu0
        %v1781 = vadd.f32 0.0, %v1780
        %v1782 = vpop.f32.mrf.mxu0
        %1783 = vmatprep.mubr.bf16.mxu0 0
        %1784 = vmatmul.mubr.bf16.gmra.mxu0 %v1050
        %v1785 = vpop.f32.mrf.mxu0
        %v1786 = vadd.f32 0.0, %v1785
        %v1787 = vpop.f32.mrf.mxu0
        %v1788 = vpop.f32.mrf.mxu0
        %v1789 = vadd.f32 0.0, %v1788
        %v1790 = vpop.f32.mrf.mxu0
        %1791 = vmatprep.mubr.bf16.mxu0 0
        %1792 = vmatmul.mubr.bf16.gmra.mxu0 %v1053
        %v1793 = vpop.f32.mrf.mxu0
        %v1794 = vadd.f32 0.0, %v1793
        %v1795 = vpop.f32.mrf.mxu0
        %v1796 = vpop.f32.mrf.mxu0
        %v1797 = vadd.f32 0.0, %v1796
        %v1798 = vpop.f32.mrf.mxu0
        %1799 = vmatprep.mubr.bf16.mxu0 0
        %1800 = vmatmul.mubr.bf16.gmra.mxu0 %v1056
        %v1801 = vpop.f32.mrf.mxu0
        %v1802 = vadd.f32 0.0, %v1801
        %v1803 = vpop.f32.mrf.mxu0
        %v1804 = vpop.f32.mrf.mxu0
        %v1805 = vadd.f32 0.0, %v1804
        %v1806 = vpop.f32.mrf.mxu0
        %1807 = vmatprep.mubr.bf16.mxu0 0
        %1808 = vmatmul.mubr.bf16.gmra.mxu0 %v1059
        %v1809 = vpop.f32.mrf.mxu0
        %v1810 = vadd.f32 0.0, %v1809
        %v1811 = vpop.f32.mrf.mxu0
        %v1812 = vpop.f32.mrf.mxu0
        %v1813 = vadd.f32 0.0, %v1812
        %v1814 = vpop.f32.mrf.mxu0
        %1815 = vmatprep.mubr.bf16.mxu0 0
        %1816 = vmatmul.mubr.bf16.gmra.mxu0 %v1658
        %v1817 = vpop.f32.mrf.mxu0
        %v1818 = vadd.f32 0.0, %v1817
        %v1819 = vpop.f32.mrf.mxu0
        %v1820 = vpop.f32.mrf.mxu0
        %v1821 = vadd.f32 0.0, %v1820
        %v1822 = vpop.f32.mrf.mxu0
        %1823 = vdwg.mxu0
        %v1824 = vadd.f32 %v1618, %v1698
        %v1825 = vadd.f32 %v1619, %v1701
        %v1826 = vadd.f32 %v1620, %v1706
        %v1827 = vadd.f32 %v1621, %v1709
        %v1828 = vadd.f32 %v1622, %v1714
        %v1829 = vadd.f32 %v1623, %v1717
        %v1830 = vadd.f32 %v1624, %v1722
        %v1831 = vadd.f32 %v1625, %v1725
        %v1832 = vadd.f32 %v1626, %v1730
        %v1833 = vadd.f32 %v1627, %v1733
        %v1834 = vadd.f32 %v1628, %v1738
        %v1835 = vadd.f32 %v1629, %v1741
        %v1836 = vadd.f32 %v1630, %v1746
        %v1837 = vadd.f32 %v1631, %v1749
        %v1838 = vadd.f32 %v1632, %v1754
        %v1839 = vadd.f32 %v1633, %v1757
        %v1840 = vadd.f32 %v1634, %v1762
        %v1841 = vadd.f32 %v1635, %v1765
        %v1842 = vadd.f32 %v1636, %v1770
        %v1843 = vadd.f32 %v1637, %v1773
        %v1844 = vadd.f32 %v1638, %v1778
        %v1845 = vadd.f32 %v1639, %v1781
        %v1846 = vadd.f32 %v1640, %v1786
        %v1847 = vadd.f32 %v1641, %v1789
        %v1848 = vadd.f32 %v1642, %v1794
        %v1849 = vadd.f32 %v1643, %v1797
        %v1850 = vadd.f32 %v1644, %v1802
        %v1851 = vadd.f32 %v1645, %v1805
        %v1852 = vadd.f32 %v1646, %v1810
        %v1853 = vadd.f32 %v1647, %v1813
        %v1854 = vadd.f32 %v1648, %v1818
        %v1855 = vadd.f32 %v1649, %v1821
        %v1857 = vshrl.u32 %v275, 16
        %v1859 = vrot.slane %v1857, 4
        %v1860 = vshll.u32 %v275, 16
        %v1862 = vrot.slane %v1860, 5
        %v1863 = vor.u32 %v1859, %v1862
        %v1864 = vrot.slane %v1863, 4
        %v1866 = vshll.u32 %v276, 16
        %v1868 = vrot.slane %v1866, 5
        %v1869 = vsel %vm284, %v1864, %v1868
        %v1870 = vshrl.u32 %v276, 16
        %v1872 = vrot.slane %v1870, 4
        %v1873 = vor.u32 %v1872, %v1868
        %v1874 = vrot.slane %v1873, 4
        %v1876 = vshll.u32 %v277, 16
        %v1878 = vrot.slane %v1876, 5
        %v1879 = vsel %vm284, %v1874, %v1878
        %s1880 = scalar_lea.vmem %s1, 8
        %v1881 = vld [vmem:[%s1880] sm:$0x3]
        %v1882 = vunpack.c.l.b16 %v1869
        %v1883 = vunpack.c.l.b16 %v1879
        %v1884 = vpack.c.b16 %v1883, %v1882
        %v1886 = vsel %vm719, %v1884, 0
        %v1889 = vsel %vm768, %v1881, 0
        %1891 = vmatprep.subr.bf16.mxu0 0
        %1892 = vmatpush1.bf16.msra.mxu0 0
        %1893 = vmatprep.subr.bf16.mxu0 0
        %1894 = vmatpush1.bf16.msra.mxu0 0
        %1895 = vmatprep.subr.bf16.mxu0 0
        %1896 = vmatpush1.bf16.msra.mxu0 0
        %1897 = vmatprep.subr.bf16.mxu0 0
        %1898 = vmatpush1.bf16.msra.mxu0 0
        %1899 = vmatprep.subr.bf16.mxu0 0
        %1900 = vmatpush1.bf16.msra.mxu0 0
        %1901 = vmatprep.subr.bf16.mxu0 0
        %1902 = vmatpush1.bf16.msra.mxu0 0
        %1903 = vmatprep.subr.bf16.mxu0 0
        %1904 = vmatpush1.bf16.msra.mxu0 0
        %1905 = vmatprep.subr.bf16.mxu0 0
        %1906 = vmatpush1.bf16.msra.mxu0 %v1889
        %1907 = vmatprep.subr.bf16.mxu0 0
        %1908 = vmatpush2.bf16.msra.mxu0 0
        %1909 = vmatprep.subr.bf16.mxu0 0
        %1910 = vmatpush2.bf16.msra.mxu0 0
        %1911 = vmatprep.subr.bf16.mxu0 0
        %1912 = vmatpush2.bf16.msra.mxu0 0
        %1913 = vmatprep.subr.bf16.mxu0 0
        %1914 = vmatpush2.bf16.msra.mxu0 0
        %1915 = vmatprep.subr.bf16.mxu0 0
        %1916 = vmatpush2.bf16.msra.mxu0 0
        %1917 = vmatprep.subr.bf16.mxu0 0
        %1918 = vmatpush2.bf16.msra.mxu0 0
        %1919 = vmatprep.subr.bf16.mxu0 0
        %1920 = vmatpush2.bf16.msra.mxu0 0
        %1921 = vmatprep.subr.bf16.mxu0 0
        %1922 = vmatpush2.bf16.msra.mxu0 0
        %1923 = vmatprep.mubr.bf16.mxu0 0
        %1924 = vmatmul.mubr.bf16.gmra.mxu0 %v724
        %v1925 = vpop.f32.mrf.mxu0
        %v1926 = vadd.f32 0.0, %v1925
        %v1927 = vpop.f32.mrf.mxu0
        %v1928 = vpop.f32.mrf.mxu0
        %v1929 = vadd.f32 0.0, %v1928
        %v1930 = vpop.f32.mrf.mxu0
        %1931 = vmatprep.mubr.bf16.mxu0 0
        %1932 = vmatmul.mubr.bf16.gmra.mxu0 %v727
        %v1933 = vpop.f32.mrf.mxu0
        %v1934 = vadd.f32 0.0, %v1933
        %v1935 = vpop.f32.mrf.mxu0
        %v1936 = vpop.f32.mrf.mxu0
        %v1937 = vadd.f32 0.0, %v1936
        %v1938 = vpop.f32.mrf.mxu0
        %1939 = vmatprep.mubr.bf16.mxu0 0
        %1940 = vmatmul.mubr.bf16.gmra.mxu0 %v730
        %v1941 = vpop.f32.mrf.mxu0
        %v1942 = vadd.f32 0.0, %v1941
        %v1943 = vpop.f32.mrf.mxu0
        %v1944 = vpop.f32.mrf.mxu0
        %v1945 = vadd.f32 0.0, %v1944
        %v1946 = vpop.f32.mrf.mxu0
        %1947 = vmatprep.mubr.bf16.mxu0 0
        %1948 = vmatmul.mubr.bf16.gmra.mxu0 %v733
        %v1949 = vpop.f32.mrf.mxu0
        %v1950 = vadd.f32 0.0, %v1949
        %v1951 = vpop.f32.mrf.mxu0
        %v1952 = vpop.f32.mrf.mxu0
        %v1953 = vadd.f32 0.0, %v1952
        %v1954 = vpop.f32.mrf.mxu0
        %1955 = vmatprep.mubr.bf16.mxu0 0
        %1956 = vmatmul.mubr.bf16.gmra.mxu0 %v736
        %v1957 = vpop.f32.mrf.mxu0
        %v1958 = vadd.f32 0.0, %v1957
        %v1959 = vpop.f32.mrf.mxu0
        %v1960 = vpop.f32.mrf.mxu0
        %v1961 = vadd.f32 0.0, %v1960
        %v1962 = vpop.f32.mrf.mxu0
        %1963 = vmatprep.mubr.bf16.mxu0 0
        %1964 = vmatmul.mubr.bf16.gmra.mxu0 %v739
        %v1965 = vpop.f32.mrf.mxu0
        %v1966 = vadd.f32 0.0, %v1965
        %v1967 = vpop.f32.mrf.mxu0
        %v1968 = vpop.f32.mrf.mxu0
        %v1969 = vadd.f32 0.0, %v1968
        %v1970 = vpop.f32.mrf.mxu0
        %1971 = vmatprep.mubr.bf16.mxu0 0
        %1972 = vmatmul.mubr.bf16.gmra.mxu0 %v742
        %v1973 = vpop.f32.mrf.mxu0
        %v1974 = vadd.f32 0.0, %v1973
        %v1975 = vpop.f32.mrf.mxu0
        %v1976 = vpop.f32.mrf.mxu0
        %v1977 = vadd.f32 0.0, %v1976
        %v1978 = vpop.f32.mrf.mxu0
        %1979 = vmatprep.mubr.bf16.mxu0 0
        %1980 = vmatmul.mubr.bf16.gmra.mxu0 %v745
        %v1981 = vpop.f32.mrf.mxu0
        %v1982 = vadd.f32 0.0, %v1981
        %v1983 = vpop.f32.mrf.mxu0
        %v1984 = vpop.f32.mrf.mxu0
        %v1985 = vadd.f32 0.0, %v1984
        %v1986 = vpop.f32.mrf.mxu0
        %1987 = vmatprep.mubr.bf16.mxu0 0
        %1988 = vmatmul.mubr.bf16.gmra.mxu0 %v748
        %v1989 = vpop.f32.mrf.mxu0
        %v1990 = vadd.f32 0.0, %v1989
        %v1991 = vpop.f32.mrf.mxu0
        %v1992 = vpop.f32.mrf.mxu0
        %v1993 = vadd.f32 0.0, %v1992
        %v1994 = vpop.f32.mrf.mxu0
        %1995 = vmatprep.mubr.bf16.mxu0 0
        %1996 = vmatmul.mubr.bf16.gmra.mxu0 %v751
        %v1997 = vpop.f32.mrf.mxu0
        %v1998 = vadd.f32 0.0, %v1997
        %v1999 = vpop.f32.mrf.mxu0
        %v2000 = vpop.f32.mrf.mxu0
        %v2001 = vadd.f32 0.0, %v2000
        %v2002 = vpop.f32.mrf.mxu0
        %2003 = vmatprep.mubr.bf16.mxu0 0
        %2004 = vmatmul.mubr.bf16.gmra.mxu0 %v754
        %v2005 = vpop.f32.mrf.mxu0
        %v2006 = vadd.f32 0.0, %v2005
        %v2007 = vpop.f32.mrf.mxu0
        %v2008 = vpop.f32.mrf.mxu0
        %v2009 = vadd.f32 0.0, %v2008
        %v2010 = vpop.f32.mrf.mxu0
        %2011 = vmatprep.mubr.bf16.mxu0 0
        %2012 = vmatmul.mubr.bf16.gmra.mxu0 %v757
        %v2013 = vpop.f32.mrf.mxu0
        %v2014 = vadd.f32 0.0, %v2013
        %v2015 = vpop.f32.mrf.mxu0
        %v2016 = vpop.f32.mrf.mxu0
        %v2017 = vadd.f32 0.0, %v2016
        %v2018 = vpop.f32.mrf.mxu0
        %2019 = vmatprep.mubr.bf16.mxu0 0
        %2020 = vmatmul.mubr.bf16.gmra.mxu0 %v760
        %v2021 = vpop.f32.mrf.mxu0
        %v2022 = vadd.f32 0.0, %v2021
        %v2023 = vpop.f32.mrf.mxu0
        %v2024 = vpop.f32.mrf.mxu0
        %v2025 = vadd.f32 0.0, %v2024
        %v2026 = vpop.f32.mrf.mxu0
        %2027 = vmatprep.mubr.bf16.mxu0 0
        %2028 = vmatmul.mubr.bf16.gmra.mxu0 %v763
        %v2029 = vpop.f32.mrf.mxu0
        %v2030 = vadd.f32 0.0, %v2029
        %v2031 = vpop.f32.mrf.mxu0
        %v2032 = vpop.f32.mrf.mxu0
        %v2033 = vadd.f32 0.0, %v2032
        %v2034 = vpop.f32.mrf.mxu0
        %2035 = vmatprep.mubr.bf16.mxu0 0
        %2036 = vmatmul.mubr.bf16.gmra.mxu0 %v766
        %v2037 = vpop.f32.mrf.mxu0
        %v2038 = vadd.f32 0.0, %v2037
        %v2039 = vpop.f32.mrf.mxu0
        %v2040 = vpop.f32.mrf.mxu0
        %v2041 = vadd.f32 0.0, %v2040
        %v2042 = vpop.f32.mrf.mxu0
        %2043 = vmatprep.mubr.bf16.mxu0 0
        %2044 = vmatmul.mubr.bf16.gmra.mxu0 %v1886
        %v2045 = vpop.f32.mrf.mxu0
        %v2046 = vadd.f32 0.0, %v2045
        %v2047 = vpop.f32.mrf.mxu0
        %v2048 = vpop.f32.mrf.mxu0
        %v2049 = vadd.f32 0.0, %v2048
        %v2050 = vpop.f32.mrf.mxu0
        %2051 = vdwg.mxu0
        %v2052 = vadd.f32 %v1824, %v1926
        %v2053 = vadd.f32 %v1825, %v1929
        %v2054 = vadd.f32 %v1826, %v1934
        %v2055 = vadd.f32 %v1827, %v1937
        %v2056 = vadd.f32 %v1828, %v1942
        %v2057 = vadd.f32 %v1829, %v1945
        %v2058 = vadd.f32 %v1830, %v1950
        %v2059 = vadd.f32 %v1831, %v1953
        %v2060 = vadd.f32 %v1832, %v1958
        %v2061 = vadd.f32 %v1833, %v1961
        %v2062 = vadd.f32 %v1834, %v1966
        %v2063 = vadd.f32 %v1835, %v1969
        %v2064 = vadd.f32 %v1836, %v1974
        %v2065 = vadd.f32 %v1837, %v1977
        %v2066 = vadd.f32 %v1838, %v1982
        %v2067 = vadd.f32 %v1839, %v1985
        %v2068 = vadd.f32 %v1840, %v1990
        %v2069 = vadd.f32 %v1841, %v1993
        %v2070 = vadd.f32 %v1842, %v1998
        %v2071 = vadd.f32 %v1843, %v2001
        %v2072 = vadd.f32 %v1844, %v2006
        %v2073 = vadd.f32 %v1845, %v2009
        %v2074 = vadd.f32 %v1846, %v2014
        %v2075 = vadd.f32 %v1847, %v2017
        %v2076 = vadd.f32 %v1848, %v2022
        %v2077 = vadd.f32 %v1849, %v2025
        %v2078 = vadd.f32 %v1850, %v2030
        %v2079 = vadd.f32 %v1851, %v2033
        %v2080 = vadd.f32 %v1852, %v2038
        %v2081 = vadd.f32 %v1853, %v2041
        %v2082 = vadd.f32 %v1854, %v2046
        %v2083 = vadd.f32 %v1855, %v2049
        %v2085 = vrot.slane %v275, 5
        %v2086 = vrot.slane %v2085, 4
        %v2087 = vrot.slane %v276, 5
        %v2088 = vsel %vm1243, %v2086, %v2087
        %v2089 = vrot.slane %v2087, 4
        %v2090 = vrot.slane %v277, 5
        %v2091 = vsel %vm1243, %v2089, %v2090
        %s2092 = scalar_lea.vmem %s1, 10
        %v2093 = vld [vmem:[%s2092] sm:$0x3]
        %v2094 = vunpack.c.l.b16 %v2088
        %v2095 = vunpack.c.l.b16 %v2091
        %v2096 = vpack.c.b16 %v2095, %v2094
        %v2098 = vsel %vm719, %v2096, 0
        %v2101 = vsel %vm768, %v2093, 0
        %2103 = vmatprep.subr.bf16.mxu0 0
        %2104 = vmatpush1.bf16.msra.mxu0 0
        %2105 = vmatprep.subr.bf16.mxu0 0
        %2106 = vmatpush1.bf16.msra.mxu0 0
        %2107 = vmatprep.subr.bf16.mxu0 0
        %2108 = vmatpush1.bf16.msra.mxu0 0
        %2109 = vmatprep.subr.bf16.mxu0 0
        %2110 = vmatpush1.bf16.msra.mxu0 0
        %2111 = vmatprep.subr.bf16.mxu0 0
        %2112 = vmatpush1.bf16.msra.mxu0 0
        %2113 = vmatprep.subr.bf16.mxu0 0
        %2114 = vmatpush1.bf16.msra.mxu0 0
        %2115 = vmatprep.subr.bf16.mxu0 0
        %2116 = vmatpush1.bf16.msra.mxu0 0
        %2117 = vmatprep.subr.bf16.mxu0 0
        %2118 = vmatpush1.bf16.msra.mxu0 %v2101
        %2119 = vmatprep.subr.bf16.mxu0 0
        %2120 = vmatpush2.bf16.msra.mxu0 0
        %2121 = vmatprep.subr.bf16.mxu0 0
        %2122 = vmatpush2.bf16.msra.mxu0 0
        %2123 = vmatprep.subr.bf16.mxu0 0
        %2124 = vmatpush2.bf16.msra.mxu0 0
        %2125 = vmatprep.subr.bf16.mxu0 0
        %2126 = vmatpush2.bf16.msra.mxu0 0
        %2127 = vmatprep.subr.bf16.mxu0 0
        %2128 = vmatpush2.bf16.msra.mxu0 0
        %2129 = vmatprep.subr.bf16.mxu0 0
        %2130 = vmatpush2.bf16.msra.mxu0 0
        %2131 = vmatprep.subr.bf16.mxu0 0
        %2132 = vmatpush2.bf16.msra.mxu0 0
        %2133 = vmatprep.subr.bf16.mxu0 0
        %2134 = vmatpush2.bf16.msra.mxu0 0
        %2135 = vmatprep.mubr.bf16.mxu0 0
        %2136 = vmatmul.mubr.bf16.gmra.mxu0 %v1410
        %v2137 = vpop.f32.mrf.mxu0
        %v2138 = vadd.f32 0.0, %v2137
        %v2139 = vpop.f32.mrf.mxu0
        %v2140 = vpop.f32.mrf.mxu0
        %v2141 = vadd.f32 0.0, %v2140
        %v2142 = vpop.f32.mrf.mxu0
        %2143 = vmatprep.mubr.bf16.mxu0 0
        %2144 = vmatmul.mubr.bf16.gmra.mxu0 %v1413
        %v2145 = vpop.f32.mrf.mxu0
        %v2146 = vadd.f32 0.0, %v2145
        %v2147 = vpop.f32.mrf.mxu0
        %v2148 = vpop.f32.mrf.mxu0
        %v2149 = vadd.f32 0.0, %v2148
        %v2150 = vpop.f32.mrf.mxu0
        %2151 = vmatprep.mubr.bf16.mxu0 0
        %2152 = vmatmul.mubr.bf16.gmra.mxu0 %v1416
        %v2153 = vpop.f32.mrf.mxu0
        %v2154 = vadd.f32 0.0, %v2153
        %v2155 = vpop.f32.mrf.mxu0
        %v2156 = vpop.f32.mrf.mxu0
        %v2157 = vadd.f32 0.0, %v2156
        %v2158 = vpop.f32.mrf.mxu0
        %2159 = vmatprep.mubr.bf16.mxu0 0
        %2160 = vmatmul.mubr.bf16.gmra.mxu0 %v1419
        %v2161 = vpop.f32.mrf.mxu0
        %v2162 = vadd.f32 0.0, %v2161
        %v2163 = vpop.f32.mrf.mxu0
        %v2164 = vpop.f32.mrf.mxu0
        %v2165 = vadd.f32 0.0, %v2164
        %v2166 = vpop.f32.mrf.mxu0
        %2167 = vmatprep.mubr.bf16.mxu0 0
        %2168 = vmatmul.mubr.bf16.gmra.mxu0 %v1422
        %v2169 = vpop.f32.mrf.mxu0
        %v2170 = vadd.f32 0.0, %v2169
        %v2171 = vpop.f32.mrf.mxu0
        %v2172 = vpop.f32.mrf.mxu0
        %v2173 = vadd.f32 0.0, %v2172
        %v2174 = vpop.f32.mrf.mxu0
        %2175 = vmatprep.mubr.bf16.mxu0 0
        %2176 = vmatmul.mubr.bf16.gmra.mxu0 %v1425
        %v2177 = vpop.f32.mrf.mxu0
        %v2178 = vadd.f32 0.0, %v2177
        %v2179 = vpop.f32.mrf.mxu0
        %v2180 = vpop.f32.mrf.mxu0
        %v2181 = vadd.f32 0.0, %v2180
        %v2182 = vpop.f32.mrf.mxu0
        %2183 = vmatprep.mubr.bf16.mxu0 0
        %2184 = vmatmul.mubr.bf16.gmra.mxu0 %v1428
        %v2185 = vpop.f32.mrf.mxu0
        %v2186 = vadd.f32 0.0, %v2185
        %v2187 = vpop.f32.mrf.mxu0
        %v2188 = vpop.f32.mrf.mxu0
        %v2189 = vadd.f32 0.0, %v2188
        %v2190 = vpop.f32.mrf.mxu0
        %2191 = vmatprep.mubr.bf16.mxu0 0
        %2192 = vmatmul.mubr.bf16.gmra.mxu0 %v1431
        %v2193 = vpop.f32.mrf.mxu0
        %v2194 = vadd.f32 0.0, %v2193
        %v2195 = vpop.f32.mrf.mxu0
        %v2196 = vpop.f32.mrf.mxu0
        %v2197 = vadd.f32 0.0, %v2196
        %v2198 = vpop.f32.mrf.mxu0
        %2199 = vmatprep.mubr.bf16.mxu0 0
        %2200 = vmatmul.mubr.bf16.gmra.mxu0 %v1434
        %v2201 = vpop.f32.mrf.mxu0
        %v2202 = vadd.f32 0.0, %v2201
        %v2203 = vpop.f32.mrf.mxu0
        %v2204 = vpop.f32.mrf.mxu0
        %v2205 = vadd.f32 0.0, %v2204
        %v2206 = vpop.f32.mrf.mxu0
        %2207 = vmatprep.mubr.bf16.mxu0 0
        %2208 = vmatmul.mubr.bf16.gmra.mxu0 %v1437
        %v2209 = vpop.f32.mrf.mxu0
        %v2210 = vadd.f32 0.0, %v2209
        %v2211 = vpop.f32.mrf.mxu0
        %v2212 = vpop.f32.mrf.mxu0
        %v2213 = vadd.f32 0.0, %v2212
        %v2214 = vpop.f32.mrf.mxu0
        %2215 = vmatprep.mubr.bf16.mxu0 0
        %2216 = vmatmul.mubr.bf16.gmra.mxu0 %v1440
        %v2217 = vpop.f32.mrf.mxu0
        %v2218 = vadd.f32 0.0, %v2217
        %v2219 = vpop.f32.mrf.mxu0
        %v2220 = vpop.f32.mrf.mxu0
        %v2221 = vadd.f32 0.0, %v2220
        %v2222 = vpop.f32.mrf.mxu0
        %2223 = vmatprep.mubr.bf16.mxu0 0
        %2224 = vmatmul.mubr.bf16.gmra.mxu0 %v1443
        %v2225 = vpop.f32.mrf.mxu0
        %v2226 = vadd.f32 0.0, %v2225
        %v2227 = vpop.f32.mrf.mxu0
        %v2228 = vpop.f32.mrf.mxu0
        %v2229 = vadd.f32 0.0, %v2228
        %v2230 = vpop.f32.mrf.mxu0
        %2231 = vmatprep.mubr.bf16.mxu0 0
        %2232 = vmatmul.mubr.bf16.gmra.mxu0 %v1446
        %v2233 = vpop.f32.mrf.mxu0
        %v2234 = vadd.f32 0.0, %v2233
        %v2235 = vpop.f32.mrf.mxu0
        %v2236 = vpop.f32.mrf.mxu0
        %v2237 = vadd.f32 0.0, %v2236
        %v2238 = vpop.f32.mrf.mxu0
        %2239 = vmatprep.mubr.bf16.mxu0 0
        %2240 = vmatmul.mubr.bf16.gmra.mxu0 %v1449
        %v2241 = vpop.f32.mrf.mxu0
        %v2242 = vadd.f32 0.0, %v2241
        %v2243 = vpop.f32.mrf.mxu0
        %v2244 = vpop.f32.mrf.mxu0
        %v2245 = vadd.f32 0.0, %v2244
        %v2246 = vpop.f32.mrf.mxu0
        %2247 = vmatprep.mubr.bf16.mxu0 0
        %2248 = vmatmul.mubr.bf16.gmra.mxu0 %v1452
        %v2249 = vpop.f32.mrf.mxu0
        %v2250 = vadd.f32 0.0, %v2249
        %v2251 = vpop.f32.mrf.mxu0
        %v2252 = vpop.f32.mrf.mxu0
        %v2253 = vadd.f32 0.0, %v2252
        %v2254 = vpop.f32.mrf.mxu0
        %2255 = vmatprep.mubr.bf16.mxu0 0
        %2256 = vmatmul.mubr.bf16.gmra.mxu0 %v2098
        %v2257 = vpop.f32.mrf.mxu0
        %v2258 = vadd.f32 0.0, %v2257
        %v2259 = vpop.f32.mrf.mxu0
        %v2260 = vpop.f32.mrf.mxu0
        %v2261 = vadd.f32 0.0, %v2260
        %v2262 = vpop.f32.mrf.mxu0
        %2263 = vdwg.mxu0
        %v2264 = vadd.f32 %v2052, %v2138
        %v2265 = vadd.f32 %v2053, %v2141
        %v2266 = vadd.f32 %v2054, %v2146
        %v2267 = vadd.f32 %v2055, %v2149
        %v2268 = vadd.f32 %v2056, %v2154
        %v2269 = vadd.f32 %v2057, %v2157
        %v2270 = vadd.f32 %v2058, %v2162
        %v2271 = vadd.f32 %v2059, %v2165
        %v2272 = vadd.f32 %v2060, %v2170
        %v2273 = vadd.f32 %v2061, %v2173
        %v2274 = vadd.f32 %v2062, %v2178
        %v2275 = vadd.f32 %v2063, %v2181
        %v2276 = vadd.f32 %v2064, %v2186
        %v2277 = vadd.f32 %v2065, %v2189
        %v2278 = vadd.f32 %v2066, %v2194
        %v2279 = vadd.f32 %v2067, %v2197
        %v2280 = vadd.f32 %v2068, %v2202
        %v2281 = vadd.f32 %v2069, %v2205
        %v2282 = vadd.f32 %v2070, %v2210
        %v2283 = vadd.f32 %v2071, %v2213
        %v2284 = vadd.f32 %v2072, %v2218
        %v2285 = vadd.f32 %v2073, %v2221
        %v2286 = vadd.f32 %v2074, %v2226
        %v2287 = vadd.f32 %v2075, %v2229
        %v2288 = vadd.f32 %v2076, %v2234
        %v2289 = vadd.f32 %v2077, %v2237
        %v2290 = vadd.f32 %v2078, %v2242
        %v2291 = vadd.f32 %v2079, %v2245
        %v2292 = vadd.f32 %v2080, %v2250
        %v2293 = vadd.f32 %v2081, %v2253
        %v2294 = vadd.f32 %v2082, %v2258
        %v2295 = vadd.f32 %v2083, %v2261
        %s2296 = scalar_lea.vmem %s1, 12
        %v2297 = vld [vmem:[%s2296] sm:$0x3]
        %v2300 = vunpack.c.l.b16 %v278
        %v2301 = vunpack.c.l.b16 %v279
        %v2302 = vpack.c.b16 %v2301, %v2300
        %v2304 = vsel %vm719, %v2302, 0
        %v2307 = vsel %vm768, %v2297, 0
        %2309 = vmatprep.subr.bf16.mxu0 0
        %2310 = vmatpush1.bf16.msra.mxu0 0
        %2311 = vmatprep.subr.bf16.mxu0 0
        %2312 = vmatpush1.bf16.msra.mxu0 0
        %2313 = vmatprep.subr.bf16.mxu0 0
        %2314 = vmatpush1.bf16.msra.mxu0 0
        %2315 = vmatprep.subr.bf16.mxu0 0
        %2316 = vmatpush1.bf16.msra.mxu0 0
        %2317 = vmatprep.subr.bf16.mxu0 0
        %2318 = vmatpush1.bf16.msra.mxu0 0
        %2319 = vmatprep.subr.bf16.mxu0 0
        %2320 = vmatpush1.bf16.msra.mxu0 0
        %2321 = vmatprep.subr.bf16.mxu0 0
        %2322 = vmatpush1.bf16.msra.mxu0 0
        %2323 = vmatprep.subr.bf16.mxu0 0
        %2324 = vmatpush1.bf16.msra.mxu0 %v2307
        %2325 = vmatprep.subr.bf16.mxu0 0
        %2326 = vmatpush2.bf16.msra.mxu0 0
        %2327 = vmatprep.subr.bf16.mxu0 0
        %2328 = vmatpush2.bf16.msra.mxu0 0
        %2329 = vmatprep.subr.bf16.mxu0 0
        %2330 = vmatpush2.bf16.msra.mxu0 0
        %2331 = vmatprep.subr.bf16.mxu0 0
        %2332 = vmatpush2.bf16.msra.mxu0 0
        %2333 = vmatprep.subr.bf16.mxu0 0
        %2334 = vmatpush2.bf16.msra.mxu0 0
        %2335 = vmatprep.subr.bf16.mxu0 0
        %2336 = vmatpush2.bf16.msra.mxu0 0
        %2337 = vmatprep.subr.bf16.mxu0 0
        %2338 = vmatpush2.bf16.msra.mxu0 0
        %2339 = vmatprep.subr.bf16.mxu0 0
        %2340 = vmatpush2.bf16.msra.mxu0 0
        %2341 = vmatprep.mubr.bf16.mxu0 0
        %2342 = vmatmul.mubr.bf16.gmra.mxu0 %v1020
        %v2343 = vpop.f32.mrf.mxu0
        %v2344 = vadd.f32 0.0, %v2343
        %v2345 = vpop.f32.mrf.mxu0
        %v2346 = vpop.f32.mrf.mxu0
        %v2347 = vadd.f32 0.0, %v2346
        %v2348 = vpop.f32.mrf.mxu0
        %2349 = vmatprep.mubr.bf16.mxu0 0
        %2350 = vmatmul.mubr.bf16.gmra.mxu0 %v1023
        %v2351 = vpop.f32.mrf.mxu0
        %v2352 = vadd.f32 0.0, %v2351
        %v2353 = vpop.f32.mrf.mxu0
        %v2354 = vpop.f32.mrf.mxu0
        %v2355 = vadd.f32 0.0, %v2354
        %v2356 = vpop.f32.mrf.mxu0
        %2357 = vmatprep.mubr.bf16.mxu0 0
        %2358 = vmatmul.mubr.bf16.gmra.mxu0 %v1026
        %v2359 = vpop.f32.mrf.mxu0
        %v2360 = vadd.f32 0.0, %v2359
        %v2361 = vpop.f32.mrf.mxu0
        %v2362 = vpop.f32.mrf.mxu0
        %v2363 = vadd.f32 0.0, %v2362
        %v2364 = vpop.f32.mrf.mxu0
        %2365 = vmatprep.mubr.bf16.mxu0 0
        %2366 = vmatmul.mubr.bf16.gmra.mxu0 %v1029
        %v2367 = vpop.f32.mrf.mxu0
        %v2368 = vadd.f32 0.0, %v2367
        %v2369 = vpop.f32.mrf.mxu0
        %v2370 = vpop.f32.mrf.mxu0
        %v2371 = vadd.f32 0.0, %v2370
        %v2372 = vpop.f32.mrf.mxu0
        %2373 = vmatprep.mubr.bf16.mxu0 0
        %2374 = vmatmul.mubr.bf16.gmra.mxu0 %v1032
        %v2375 = vpop.f32.mrf.mxu0
        %v2376 = vadd.f32 0.0, %v2375
        %v2377 = vpop.f32.mrf.mxu0
        %v2378 = vpop.f32.mrf.mxu0
        %v2379 = vadd.f32 0.0, %v2378
        %v2380 = vpop.f32.mrf.mxu0
        %2381 = vmatprep.mubr.bf16.mxu0 0
        %2382 = vmatmul.mubr.bf16.gmra.mxu0 %v1035
        %v2383 = vpop.f32.mrf.mxu0
        %v2384 = vadd.f32 0.0, %v2383
        %v2385 = vpop.f32.mrf.mxu0
        %v2386 = vpop.f32.mrf.mxu0
        %v2387 = vadd.f32 0.0, %v2386
        %v2388 = vpop.f32.mrf.mxu0
        %2389 = vmatprep.mubr.bf16.mxu0 0
        %2390 = vmatmul.mubr.bf16.gmra.mxu0 %v1038
        %v2391 = vpop.f32.mrf.mxu0
        %v2392 = vadd.f32 0.0, %v2391
        %v2393 = vpop.f32.mrf.mxu0
        %v2394 = vpop.f32.mrf.mxu0
        %v2395 = vadd.f32 0.0, %v2394
        %v2396 = vpop.f32.mrf.mxu0
        %2397 = vmatprep.mubr.bf16.mxu0 0
        %2398 = vmatmul.mubr.bf16.gmra.mxu0 %v1041
        %v2399 = vpop.f32.mrf.mxu0
        %v2400 = vadd.f32 0.0, %v2399
        %v2401 = vpop.f32.mrf.mxu0
        %v2402 = vpop.f32.mrf.mxu0
        %v2403 = vadd.f32 0.0, %v2402
        %v2404 = vpop.f32.mrf.mxu0
        %2405 = vmatprep.mubr.bf16.mxu0 0
        %2406 = vmatmul.mubr.bf16.gmra.mxu0 %v1044
        %v2407 = vpop.f32.mrf.mxu0
        %v2408 = vadd.f32 0.0, %v2407
        %v2409 = vpop.f32.mrf.mxu0
        %v2410 = vpop.f32.mrf.mxu0
        %v2411 = vadd.f32 0.0, %v2410
        %v2412 = vpop.f32.mrf.mxu0
        %2413 = vmatprep.mubr.bf16.mxu0 0
        %2414 = vmatmul.mubr.bf16.gmra.mxu0 %v1047
        %v2415 = vpop.f32.mrf.mxu0
        %v2416 = vadd.f32 0.0, %v2415
        %v2417 = vpop.f32.mrf.mxu0
        %v2418 = vpop.f32.mrf.mxu0
        %v2419 = vadd.f32 0.0, %v2418
        %v2420 = vpop.f32.mrf.mxu0
        %2421 = vmatprep.mubr.bf16.mxu0 0
        %2422 = vmatmul.mubr.bf16.gmra.mxu0 %v1050
        %v2423 = vpop.f32.mrf.mxu0
        %v2424 = vadd.f32 0.0, %v2423
        %v2425 = vpop.f32.mrf.mxu0
        %v2426 = vpop.f32.mrf.mxu0
        %v2427 = vadd.f32 0.0, %v2426
        %v2428 = vpop.f32.mrf.mxu0
        %2429 = vmatprep.mubr.bf16.mxu0 0
        %2430 = vmatmul.mubr.bf16.gmra.mxu0 %v1053
        %v2431 = vpop.f32.mrf.mxu0
        %v2432 = vadd.f32 0.0, %v2431
        %v2433 = vpop.f32.mrf.mxu0
        %v2434 = vpop.f32.mrf.mxu0
        %v2435 = vadd.f32 0.0, %v2434
        %v2436 = vpop.f32.mrf.mxu0
        %2437 = vmatprep.mubr.bf16.mxu0 0
        %2438 = vmatmul.mubr.bf16.gmra.mxu0 %v1056
        %v2439 = vpop.f32.mrf.mxu0
        %v2440 = vadd.f32 0.0, %v2439
        %v2441 = vpop.f32.mrf.mxu0
        %v2442 = vpop.f32.mrf.mxu0
        %v2443 = vadd.f32 0.0, %v2442
        %v2444 = vpop.f32.mrf.mxu0
        %2445 = vmatprep.mubr.bf16.mxu0 0
        %2446 = vmatmul.mubr.bf16.gmra.mxu0 %v1059
        %v2447 = vpop.f32.mrf.mxu0
        %v2448 = vadd.f32 0.0, %v2447
        %v2449 = vpop.f32.mrf.mxu0
        %v2450 = vpop.f32.mrf.mxu0
        %v2451 = vadd.f32 0.0, %v2450
        %v2452 = vpop.f32.mrf.mxu0
        %2453 = vmatprep.mubr.bf16.mxu0 0
        %2454 = vmatmul.mubr.bf16.gmra.mxu0 %v1658
        %v2455 = vpop.f32.mrf.mxu0
        %v2456 = vadd.f32 0.0, %v2455
        %v2457 = vpop.f32.mrf.mxu0
        %v2458 = vpop.f32.mrf.mxu0
        %v2459 = vadd.f32 0.0, %v2458
        %v2460 = vpop.f32.mrf.mxu0
        %2461 = vmatprep.mubr.bf16.mxu0 0
        %2462 = vmatmul.mubr.bf16.gmra.mxu0 %v2304
        %v2463 = vpop.f32.mrf.mxu0
        %v2464 = vadd.f32 0.0, %v2463
        %v2465 = vpop.f32.mrf.mxu0
        %v2466 = vpop.f32.mrf.mxu0
        %v2467 = vadd.f32 0.0, %v2466
        %v2468 = vpop.f32.mrf.mxu0
        %2469 = vdwg.mxu0
        %v2470 = vadd.f32 %v2264, %v2344
        %v2471 = vadd.f32 %v2265, %v2347
        %v2472 = vadd.f32 %v2266, %v2352
        %v2473 = vadd.f32 %v2267, %v2355
        %v2474 = vadd.f32 %v2268, %v2360
        %v2475 = vadd.f32 %v2269, %v2363
        %v2476 = vadd.f32 %v2270, %v2368
        %v2477 = vadd.f32 %v2271, %v2371
        %v2478 = vadd.f32 %v2272, %v2376
        %v2479 = vadd.f32 %v2273, %v2379
        %v2480 = vadd.f32 %v2274, %v2384
        %v2481 = vadd.f32 %v2275, %v2387
        %v2482 = vadd.f32 %v2276, %v2392
        %v2483 = vadd.f32 %v2277, %v2395
        %v2484 = vadd.f32 %v2278, %v2400
        %v2485 = vadd.f32 %v2279, %v2403
        %v2486 = vadd.f32 %v2280, %v2408
        %v2487 = vadd.f32 %v2281, %v2411
        %v2488 = vadd.f32 %v2282, %v2416
        %v2489 = vadd.f32 %v2283, %v2419
        %v2490 = vadd.f32 %v2284, %v2424
        %v2491 = vadd.f32 %v2285, %v2427
        %v2492 = vadd.f32 %v2286, %v2432
        %v2493 = vadd.f32 %v2287, %v2435
        %v2494 = vadd.f32 %v2288, %v2440
        %v2495 = vadd.f32 %v2289, %v2443
        %v2496 = vadd.f32 %v2290, %v2448
        %v2497 = vadd.f32 %v2291, %v2451
        %v2498 = vadd.f32 %v2292, %v2456
        %v2499 = vadd.f32 %v2293, %v2459
        %v2500 = vadd.f32 %v2294, %v2464
        %v2501 = vadd.f32 %v2295, %v2467
        %v2503 = vshrl.u32 %v278, 16
        %v2505 = vrot.slane %v2503, 4
        %v2506 = vshll.u32 %v278, 16
        %v2508 = vrot.slane %v2506, 5
        %v2509 = vor.u32 %v2505, %v2508
        %v2510 = vrot.slane %v2509, 4
        %v2512 = vshll.u32 %v279, 16
        %v2514 = vrot.slane %v2512, 5
        %v2515 = vsel %vm284, %v2510, %v2514
        %v2516 = vshrl.u32 %v279, 16
        %v2518 = vrot.slane %v2516, 4
        %v2519 = vor.u32 %v2518, %v2514
        %v2520 = vrot.slane %v2519, 4
        %v2522 = vshll.u32 %v280, 16
        %v2524 = vrot.slane %v2522, 5
        %v2525 = vsel %vm284, %v2520, %v2524
        %s2526 = scalar_lea.vmem %s1, 14
        %v2527 = vld [vmem:[%s2526] sm:$0x3]
        %v2528 = vunpack.c.l.b16 %v2515
        %v2529 = vunpack.c.l.b16 %v2525
        %v2530 = vpack.c.b16 %v2529, %v2528
        %v2532 = vsel %vm719, %v2530, 0
        %v2535 = vsel %vm768, %v2527, 0
        %2537 = vmatprep.subr.bf16.mxu0 0
        %2538 = vmatpush1.bf16.msra.mxu0 0
        %2539 = vmatprep.subr.bf16.mxu0 0
        %2540 = vmatpush1.bf16.msra.mxu0 0
        %2541 = vmatprep.subr.bf16.mxu0 0
        %2542 = vmatpush1.bf16.msra.mxu0 0
        %2543 = vmatprep.subr.bf16.mxu0 0
        %2544 = vmatpush1.bf16.msra.mxu0 0
        %2545 = vmatprep.subr.bf16.mxu0 0
        %2546 = vmatpush1.bf16.msra.mxu0 0
        %2547 = vmatprep.subr.bf16.mxu0 0
        %2548 = vmatpush1.bf16.msra.mxu0 0
        %2549 = vmatprep.subr.bf16.mxu0 0
        %2550 = vmatpush1.bf16.msra.mxu0 0
        %2551 = vmatprep.subr.bf16.mxu0 0
        %2552 = vmatpush1.bf16.msra.mxu0 %v2535
        %2553 = vmatprep.subr.bf16.mxu0 0
        %2554 = vmatpush2.bf16.msra.mxu0 0
        %2555 = vmatprep.subr.bf16.mxu0 0
        %2556 = vmatpush2.bf16.msra.mxu0 0
        %2557 = vmatprep.subr.bf16.mxu0 0
        %2558 = vmatpush2.bf16.msra.mxu0 0
        %2559 = vmatprep.subr.bf16.mxu0 0
        %2560 = vmatpush2.bf16.msra.mxu0 0
        %2561 = vmatprep.subr.bf16.mxu0 0
        %2562 = vmatpush2.bf16.msra.mxu0 0
        %2563 = vmatprep.subr.bf16.mxu0 0
        %2564 = vmatpush2.bf16.msra.mxu0 0
        %2565 = vmatprep.subr.bf16.mxu0 0
        %2566 = vmatpush2.bf16.msra.mxu0 0
        %2567 = vmatprep.subr.bf16.mxu0 0
        %2568 = vmatpush2.bf16.msra.mxu0 0
        %2569 = vmatprep.mubr.bf16.mxu0 0
        %2570 = vmatmul.mubr.bf16.gmra.mxu0 %v727
        %v2571 = vpop.f32.mrf.mxu0
        %v2572 = vadd.f32 0.0, %v2571
        %v2573 = vpop.f32.mrf.mxu0
        %v2574 = vpop.f32.mrf.mxu0
        %v2575 = vadd.f32 0.0, %v2574
        %v2576 = vpop.f32.mrf.mxu0
        %2577 = vmatprep.mubr.bf16.mxu0 0
        %2578 = vmatmul.mubr.bf16.gmra.mxu0 %v730
        %v2579 = vpop.f32.mrf.mxu0
        %v2580 = vadd.f32 0.0, %v2579
        %v2581 = vpop.f32.mrf.mxu0
        %v2582 = vpop.f32.mrf.mxu0
        %v2583 = vadd.f32 0.0, %v2582
        %v2584 = vpop.f32.mrf.mxu0
        %2585 = vmatprep.mubr.bf16.mxu0 0
        %2586 = vmatmul.mubr.bf16.gmra.mxu0 %v733
        %v2587 = vpop.f32.mrf.mxu0
        %v2588 = vadd.f32 0.0, %v2587
        %v2589 = vpop.f32.mrf.mxu0
        %v2590 = vpop.f32.mrf.mxu0
        %v2591 = vadd.f32 0.0, %v2590
        %v2592 = vpop.f32.mrf.mxu0
        %2593 = vmatprep.mubr.bf16.mxu0 0
        %2594 = vmatmul.mubr.bf16.gmra.mxu0 %v736
        %v2595 = vpop.f32.mrf.mxu0
        %v2596 = vadd.f32 0.0, %v2595
        %v2597 = vpop.f32.mrf.mxu0
        %v2598 = vpop.f32.mrf.mxu0
        %v2599 = vadd.f32 0.0, %v2598
        %v2600 = vpop.f32.mrf.mxu0
        %2601 = vmatprep.mubr.bf16.mxu0 0
        %2602 = vmatmul.mubr.bf16.gmra.mxu0 %v739
        %v2603 = vpop.f32.mrf.mxu0
        %v2604 = vadd.f32 0.0, %v2603
        %v2605 = vpop.f32.mrf.mxu0
        %v2606 = vpop.f32.mrf.mxu0
        %v2607 = vadd.f32 0.0, %v2606
        %v2608 = vpop.f32.mrf.mxu0
        %2609 = vmatprep.mubr.bf16.mxu0 0
        %2610 = vmatmul.mubr.bf16.gmra.mxu0 %v742
        %v2611 = vpop.f32.mrf.mxu0
        %v2612 = vadd.f32 0.0, %v2611
        %v2613 = vpop.f32.mrf.mxu0
        %v2614 = vpop.f32.mrf.mxu0
        %v2615 = vadd.f32 0.0, %v2614
        %v2616 = vpop.f32.mrf.mxu0
        %2617 = vmatprep.mubr.bf16.mxu0 0
        %2618 = vmatmul.mubr.bf16.gmra.mxu0 %v745
        %v2619 = vpop.f32.mrf.mxu0
        %v2620 = vadd.f32 0.0, %v2619
        %v2621 = vpop.f32.mrf.mxu0
        %v2622 = vpop.f32.mrf.mxu0
        %v2623 = vadd.f32 0.0, %v2622
        %v2624 = vpop.f32.mrf.mxu0
        %2625 = vmatprep.mubr.bf16.mxu0 0
        %2626 = vmatmul.mubr.bf16.gmra.mxu0 %v748
        %v2627 = vpop.f32.mrf.mxu0
        %v2628 = vadd.f32 0.0, %v2627
        %v2629 = vpop.f32.mrf.mxu0
        %v2630 = vpop.f32.mrf.mxu0
        %v2631 = vadd.f32 0.0, %v2630
        %v2632 = vpop.f32.mrf.mxu0
        %2633 = vmatprep.mubr.bf16.mxu0 0
        %2634 = vmatmul.mubr.bf16.gmra.mxu0 %v751
        %v2635 = vpop.f32.mrf.mxu0
        %v2636 = vadd.f32 0.0, %v2635
        %v2637 = vpop.f32.mrf.mxu0
        %v2638 = vpop.f32.mrf.mxu0
        %v2639 = vadd.f32 0.0, %v2638
        %v2640 = vpop.f32.mrf.mxu0
        %2641 = vmatprep.mubr.bf16.mxu0 0
        %2642 = vmatmul.mubr.bf16.gmra.mxu0 %v754
        %v2643 = vpop.f32.mrf.mxu0
        %v2644 = vadd.f32 0.0, %v2643
        %v2645 = vpop.f32.mrf.mxu0
        %v2646 = vpop.f32.mrf.mxu0
        %v2647 = vadd.f32 0.0, %v2646
        %v2648 = vpop.f32.mrf.mxu0
        %2649 = vmatprep.mubr.bf16.mxu0 0
        %2650 = vmatmul.mubr.bf16.gmra.mxu0 %v757
        %v2651 = vpop.f32.mrf.mxu0
        %v2652 = vadd.f32 0.0, %v2651
        %v2653 = vpop.f32.mrf.mxu0
        %v2654 = vpop.f32.mrf.mxu0
        %v2655 = vadd.f32 0.0, %v2654
        %v2656 = vpop.f32.mrf.mxu0
        %2657 = vmatprep.mubr.bf16.mxu0 0
        %2658 = vmatmul.mubr.bf16.gmra.mxu0 %v760
        %v2659 = vpop.f32.mrf.mxu0
        %v2660 = vadd.f32 0.0, %v2659
        %v2661 = vpop.f32.mrf.mxu0
        %v2662 = vpop.f32.mrf.mxu0
        %v2663 = vadd.f32 0.0, %v2662
        %v2664 = vpop.f32.mrf.mxu0
        %2665 = vmatprep.mubr.bf16.mxu0 0
        %2666 = vmatmul.mubr.bf16.gmra.mxu0 %v763
        %v2667 = vpop.f32.mrf.mxu0
        %v2668 = vadd.f32 0.0, %v2667
        %v2669 = vpop.f32.mrf.mxu0
        %v2670 = vpop.f32.mrf.mxu0
        %v2671 = vadd.f32 0.0, %v2670
        %v2672 = vpop.f32.mrf.mxu0
        %2673 = vmatprep.mubr.bf16.mxu0 0
        %2674 = vmatmul.mubr.bf16.gmra.mxu0 %v766
        %v2675 = vpop.f32.mrf.mxu0
        %v2676 = vadd.f32 0.0, %v2675
        %v2677 = vpop.f32.mrf.mxu0
        %v2678 = vpop.f32.mrf.mxu0
        %v2679 = vadd.f32 0.0, %v2678
        %v2680 = vpop.f32.mrf.mxu0
        %2681 = vmatprep.mubr.bf16.mxu0 0
        %2682 = vmatmul.mubr.bf16.gmra.mxu0 %v1886
        %v2683 = vpop.f32.mrf.mxu0
        %v2684 = vadd.f32 0.0, %v2683
        %v2685 = vpop.f32.mrf.mxu0
        %v2686 = vpop.f32.mrf.mxu0
        %v2687 = vadd.f32 0.0, %v2686
        %v2688 = vpop.f32.mrf.mxu0
        %2689 = vmatprep.mubr.bf16.mxu0 0
        %2690 = vmatmul.mubr.bf16.gmra.mxu0 %v2532
        %v2691 = vpop.f32.mrf.mxu0
        %v2692 = vadd.f32 0.0, %v2691
        %v2693 = vpop.f32.mrf.mxu0
        %v2694 = vpop.f32.mrf.mxu0
        %v2695 = vadd.f32 0.0, %v2694
        %v2696 = vpop.f32.mrf.mxu0
        %2697 = vdwg.mxu0
        %v2698 = vadd.f32 %v2470, %v2572
        %v2699 = vadd.f32 %v2471, %v2575
        %v2700 = vadd.f32 %v2472, %v2580
        %v2701 = vadd.f32 %v2473, %v2583
        %v2702 = vadd.f32 %v2474, %v2588
        %v2703 = vadd.f32 %v2475, %v2591
        %v2704 = vadd.f32 %v2476, %v2596
        %v2705 = vadd.f32 %v2477, %v2599
        %v2706 = vadd.f32 %v2478, %v2604
        %v2707 = vadd.f32 %v2479, %v2607
        %v2708 = vadd.f32 %v2480, %v2612
        %v2709 = vadd.f32 %v2481, %v2615
        %v2710 = vadd.f32 %v2482, %v2620
        %v2711 = vadd.f32 %v2483, %v2623
        %v2712 = vadd.f32 %v2484, %v2628
        %v2713 = vadd.f32 %v2485, %v2631
        %v2714 = vadd.f32 %v2486, %v2636
        %v2715 = vadd.f32 %v2487, %v2639
        %v2716 = vadd.f32 %v2488, %v2644
        %v2717 = vadd.f32 %v2489, %v2647
        %v2718 = vadd.f32 %v2490, %v2652
        %v2719 = vadd.f32 %v2491, %v2655
        %v2720 = vadd.f32 %v2492, %v2660
        %v2721 = vadd.f32 %v2493, %v2663
        %v2722 = vadd.f32 %v2494, %v2668
        %v2723 = vadd.f32 %v2495, %v2671
        %v2724 = vadd.f32 %v2496, %v2676
        %v2725 = vadd.f32 %v2497, %v2679
        %v2726 = vadd.f32 %v2498, %v2684
        %v2727 = vadd.f32 %v2499, %v2687
        %v2728 = vadd.f32 %v2500, %v2692
        %v2729 = vadd.f32 %v2501, %v2695
        %v2731 = vrot.slane %v278, 5
        %v2732 = vrot.slane %v2731, 4
        %v2733 = vrot.slane %v279, 5
        %v2734 = vsel %vm1243, %v2732, %v2733
        %v2735 = vrot.slane %v2733, 4
        %v2736 = vrot.slane %v280, 5
        %v2737 = vsel %vm1243, %v2735, %v2736
        %s2738 = scalar_lea.vmem %s1, 16
        %v2739 = vld [vmem:[%s2738] sm:$0x3]
        %v2740 = vunpack.c.l.b16 %v2734
        %v2741 = vunpack.c.l.b16 %v2737
        %v2742 = vpack.c.b16 %v2741, %v2740
        %v2744 = vsel %vm719, %v2742, 0
        %v2747 = vsel %vm768, %v2739, 0
        %2749 = vmatprep.subr.bf16.mxu0 0
        %2750 = vmatpush1.bf16.msra.mxu0 0
        %2751 = vmatprep.subr.bf16.mxu0 0
        %2752 = vmatpush1.bf16.msra.mxu0 0
        %2753 = vmatprep.subr.bf16.mxu0 0
        %2754 = vmatpush1.bf16.msra.mxu0 0
        %2755 = vmatprep.subr.bf16.mxu0 0
        %2756 = vmatpush1.bf16.msra.mxu0 0
        %2757 = vmatprep.subr.bf16.mxu0 0
        %2758 = vmatpush1.bf16.msra.mxu0 0
        %2759 = vmatprep.subr.bf16.mxu0 0
        %2760 = vmatpush1.bf16.msra.mxu0 0
        %2761 = vmatprep.subr.bf16.mxu0 0
        %2762 = vmatpush1.bf16.msra.mxu0 0
        %2763 = vmatprep.subr.bf16.mxu0 0
        %2764 = vmatpush1.bf16.msra.mxu0 %v2747
        %2765 = vmatprep.subr.bf16.mxu0 0
        %2766 = vmatpush2.bf16.msra.mxu0 0
        %2767 = vmatprep.subr.bf16.mxu0 0
        %2768 = vmatpush2.bf16.msra.mxu0 0
        %2769 = vmatprep.subr.bf16.mxu0 0
        %2770 = vmatpush2.bf16.msra.mxu0 0
        %2771 = vmatprep.subr.bf16.mxu0 0
        %2772 = vmatpush2.bf16.msra.mxu0 0
        %2773 = vmatprep.subr.bf16.mxu0 0
        %2774 = vmatpush2.bf16.msra.mxu0 0
        %2775 = vmatprep.subr.bf16.mxu0 0
        %2776 = vmatpush2.bf16.msra.mxu0 0
        %2777 = vmatprep.subr.bf16.mxu0 0
        %2778 = vmatpush2.bf16.msra.mxu0 0
        %2779 = vmatprep.subr.bf16.mxu0 0
        %2780 = vmatpush2.bf16.msra.mxu0 0
        %2781 = vmatprep.mubr.bf16.mxu0 0
        %2782 = vmatmul.mubr.bf16.gmra.mxu0 %v1413
        %v2783 = vpop.f32.mrf.mxu0
        %v2784 = vadd.f32 0.0, %v2783
        %v2785 = vpop.f32.mrf.mxu0
        %v2786 = vpop.f32.mrf.mxu0
        %v2787 = vadd.f32 0.0, %v2786
        %v2788 = vpop.f32.mrf.mxu0
        %2789 = vmatprep.mubr.bf16.mxu0 0
        %2790 = vmatmul.mubr.bf16.gmra.mxu0 %v1416
        %v2791 = vpop.f32.mrf.mxu0
        %v2792 = vadd.f32 0.0, %v2791
        %v2793 = vpop.f32.mrf.mxu0
        %v2794 = vpop.f32.mrf.mxu0
        %v2795 = vadd.f32 0.0, %v2794
        %v2796 = vpop.f32.mrf.mxu0
        %2797 = vmatprep.mubr.bf16.mxu0 0
        %2798 = vmatmul.mubr.bf16.gmra.mxu0 %v1419
        %v2799 = vpop.f32.mrf.mxu0
        %v2800 = vadd.f32 0.0, %v2799
        %v2801 = vpop.f32.mrf.mxu0
        %v2802 = vpop.f32.mrf.mxu0
        %v2803 = vadd.f32 0.0, %v2802
        %v2804 = vpop.f32.mrf.mxu0
        %2805 = vmatprep.mubr.bf16.mxu0 0
        %2806 = vmatmul.mubr.bf16.gmra.mxu0 %v1422
        %v2807 = vpop.f32.mrf.mxu0
        %v2808 = vadd.f32 0.0, %v2807
        %v2809 = vpop.f32.mrf.mxu0
        %v2810 = vpop.f32.mrf.mxu0
        %v2811 = vadd.f32 0.0, %v2810
        %v2812 = vpop.f32.mrf.mxu0
        %2813 = vmatprep.mubr.bf16.mxu0 0
        %2814 = vmatmul.mubr.bf16.gmra.mxu0 %v1425
        %v2815 = vpop.f32.mrf.mxu0
        %v2816 = vadd.f32 0.0, %v2815
        %v2817 = vpop.f32.mrf.mxu0
        %v2818 = vpop.f32.mrf.mxu0
        %v2819 = vadd.f32 0.0, %v2818
        %v2820 = vpop.f32.mrf.mxu0
        %2821 = vmatprep.mubr.bf16.mxu0 0
        %2822 = vmatmul.mubr.bf16.gmra.mxu0 %v1428
        %v2823 = vpop.f32.mrf.mxu0
        %v2824 = vadd.f32 0.0, %v2823
        %v2825 = vpop.f32.mrf.mxu0
        %v2826 = vpop.f32.mrf.mxu0
        %v2827 = vadd.f32 0.0, %v2826
        %v2828 = vpop.f32.mrf.mxu0
        %2829 = vmatprep.mubr.bf16.mxu0 0
        %2830 = vmatmul.mubr.bf16.gmra.mxu0 %v1431
        %v2831 = vpop.f32.mrf.mxu0
        %v2832 = vadd.f32 0.0, %v2831
        %v2833 = vpop.f32.mrf.mxu0
        %v2834 = vpop.f32.mrf.mxu0
        %v2835 = vadd.f32 0.0, %v2834
        %v2836 = vpop.f32.mrf.mxu0
        %2837 = vmatprep.mubr.bf16.mxu0 0
        %2838 = vmatmul.mubr.bf16.gmra.mxu0 %v1434
        %v2839 = vpop.f32.mrf.mxu0
        %v2840 = vadd.f32 0.0, %v2839
        %v2841 = vpop.f32.mrf.mxu0
        %v2842 = vpop.f32.mrf.mxu0
        %v2843 = vadd.f32 0.0, %v2842
        %v2844 = vpop.f32.mrf.mxu0
        %2845 = vmatprep.mubr.bf16.mxu0 0
        %2846 = vmatmul.mubr.bf16.gmra.mxu0 %v1437
        %v2847 = vpop.f32.mrf.mxu0
        %v2848 = vadd.f32 0.0, %v2847
        %v2849 = vpop.f32.mrf.mxu0
        %v2850 = vpop.f32.mrf.mxu0
        %v2851 = vadd.f32 0.0, %v2850
        %v2852 = vpop.f32.mrf.mxu0
        %2853 = vmatprep.mubr.bf16.mxu0 0
        %2854 = vmatmul.mubr.bf16.gmra.mxu0 %v1440
        %v2855 = vpop.f32.mrf.mxu0
        %v2856 = vadd.f32 0.0, %v2855
        %v2857 = vpop.f32.mrf.mxu0
        %v2858 = vpop.f32.mrf.mxu0
        %v2859 = vadd.f32 0.0, %v2858
        %v2860 = vpop.f32.mrf.mxu0
        %2861 = vmatprep.mubr.bf16.mxu0 0
        %2862 = vmatmul.mubr.bf16.gmra.mxu0 %v1443
        %v2863 = vpop.f32.mrf.mxu0
        %v2864 = vadd.f32 0.0, %v2863
        %v2865 = vpop.f32.mrf.mxu0
        %v2866 = vpop.f32.mrf.mxu0
        %v2867 = vadd.f32 0.0, %v2866
        %v2868 = vpop.f32.mrf.mxu0
        %2869 = vmatprep.mubr.bf16.mxu0 0
        %2870 = vmatmul.mubr.bf16.gmra.mxu0 %v1446
        %v2871 = vpop.f32.mrf.mxu0
        %v2872 = vadd.f32 0.0, %v2871
        %v2873 = vpop.f32.mrf.mxu0
        %v2874 = vpop.f32.mrf.mxu0
        %v2875 = vadd.f32 0.0, %v2874
        %v2876 = vpop.f32.mrf.mxu0
        %2877 = vmatprep.mubr.bf16.mxu0 0
        %2878 = vmatmul.mubr.bf16.gmra.mxu0 %v1449
        %v2879 = vpop.f32.mrf.mxu0
        %v2880 = vadd.f32 0.0, %v2879
        %v2881 = vpop.f32.mrf.mxu0
        %v2882 = vpop.f32.mrf.mxu0
        %v2883 = vadd.f32 0.0, %v2882
        %v2884 = vpop.f32.mrf.mxu0
        %2885 = vmatprep.mubr.bf16.mxu0 0
        %2886 = vmatmul.mubr.bf16.gmra.mxu0 %v1452
        %v2887 = vpop.f32.mrf.mxu0
        %v2888 = vadd.f32 0.0, %v2887
        %v2889 = vpop.f32.mrf.mxu0
        %v2890 = vpop.f32.mrf.mxu0
        %v2891 = vadd.f32 0.0, %v2890
        %v2892 = vpop.f32.mrf.mxu0
        %2893 = vmatprep.mubr.bf16.mxu0 0
        %2894 = vmatmul.mubr.bf16.gmra.mxu0 %v2098
        %v2895 = vpop.f32.mrf.mxu0
        %v2896 = vadd.f32 0.0, %v2895
        %v2897 = vpop.f32.mrf.mxu0
        %v2898 = vpop.f32.mrf.mxu0
        %v2899 = vadd.f32 0.0, %v2898
        %v2900 = vpop.f32.mrf.mxu0
        %2901 = vmatprep.mubr.bf16.mxu0 0
        %2902 = vmatmul.mubr.bf16.gmra.mxu0 %v2744
        %v2903 = vpop.f32.mrf.mxu0
        %v2904 = vadd.f32 0.0, %v2903
        %v2905 = vpop.f32.mrf.mxu0
        %v2906 = vpop.f32.mrf.mxu0
        %v2907 = vadd.f32 0.0, %v2906
        %v2908 = vpop.f32.mrf.mxu0
        %2909 = vdwg.mxu0
        %v2910 = vadd.f32 %v2698, %v2784
        %v2911 = vadd.f32 %v2699, %v2787
        %v2912 = vadd.f32 %v2700, %v2792
        %v2913 = vadd.f32 %v2701, %v2795
        %v2914 = vadd.f32 %v2702, %v2800
        %v2915 = vadd.f32 %v2703, %v2803
        %v2916 = vadd.f32 %v2704, %v2808
        %v2917 = vadd.f32 %v2705, %v2811
        %v2918 = vadd.f32 %v2706, %v2816
        %v2919 = vadd.f32 %v2707, %v2819
        %v2920 = vadd.f32 %v2708, %v2824
        %v2921 = vadd.f32 %v2709, %v2827
        %v2922 = vadd.f32 %v2710, %v2832
        %v2923 = vadd.f32 %v2711, %v2835
        %v2924 = vadd.f32 %v2712, %v2840
        %v2925 = vadd.f32 %v2713, %v2843
        %v2926 = vadd.f32 %v2714, %v2848
        %v2927 = vadd.f32 %v2715, %v2851
        %v2928 = vadd.f32 %v2716, %v2856
        %v2929 = vadd.f32 %v2717, %v2859
        %v2930 = vadd.f32 %v2718, %v2864
        %v2931 = vadd.f32 %v2719, %v2867
        %v2932 = vadd.f32 %v2720, %v2872
        %v2933 = vadd.f32 %v2721, %v2875
        %v2934 = vadd.f32 %v2722, %v2880
        %v2935 = vadd.f32 %v2723, %v2883
        %v2936 = vadd.f32 %v2724, %v2888
        %v2937 = vadd.f32 %v2725, %v2891
        %v2938 = vadd.f32 %v2726, %v2896
        %v2939 = vadd.f32 %v2727, %v2899
        %v2940 = vadd.f32 %v2728, %v2904
        %v2941 = vadd.f32 %v2729, %v2907
        %v2942 = vld [vmem:[%s2] sm:$0x1]
        %v2944 = vlaneseq
        %v2945 = vshrl.u32 %v2944, 7
        %v2946 = vsub.s32 0, %v2945
        %v2947 = vrot.slane %v2942, %v2946
        %v2949 = vadd.f32 %v2910, %v2947
        %v2950 = vadd.f32 %v2911, %v2947
        %v2951 = vadd.f32 %v2912, %v2947
        %v2952 = vadd.f32 %v2913, %v2947
        %v2953 = vadd.f32 %v2914, %v2947
        %v2954 = vadd.f32 %v2915, %v2947
        %v2955 = vadd.f32 %v2916, %v2947
        %v2956 = vadd.f32 %v2917, %v2947
        %v2957 = vadd.f32 %v2918, %v2947
        %v2958 = vadd.f32 %v2919, %v2947
        %v2959 = vadd.f32 %v2920, %v2947
        %v2960 = vadd.f32 %v2921, %v2947
        %v2961 = vadd.f32 %v2922, %v2947
        %v2962 = vadd.f32 %v2923, %v2947
        %v2963 = vadd.f32 %v2924, %v2947
        %v2964 = vadd.f32 %v2925, %v2947
        %v2965 = vadd.f32 %v2926, %v2947
        %v2966 = vadd.f32 %v2927, %v2947
        %v2967 = vadd.f32 %v2928, %v2947
        %v2968 = vadd.f32 %v2929, %v2947
        %v2969 = vadd.f32 %v2930, %v2947
        %v2970 = vadd.f32 %v2931, %v2947
        %v2971 = vadd.f32 %v2932, %v2947
        %v2972 = vadd.f32 %v2933, %v2947
        %v2973 = vadd.f32 %v2934, %v2947
        %v2974 = vadd.f32 %v2935, %v2947
        %v2975 = vadd.f32 %v2936, %v2947
        %v2976 = vadd.f32 %v2937, %v2947
        %v2977 = vadd.f32 %v2938, %v2947
        %v2978 = vadd.f32 %v2939, %v2947
        %v2979 = vadd.f32 %v2940, %v2947
        %v2980 = vadd.f32 %v2941, %v2947
        %s2981 = sld [smem:[#allocation2]]
        %vm2982 = vcmp.ge.f32.partialorder %v2949, 0.0
        %vm2983 = vcmp.ge.f32.partialorder %v2950, 0.0
        %vm2984 = vcmp.ge.f32.partialorder %v2951, 0.0
        %vm2985 = vcmp.ge.f32.partialorder %v2952, 0.0
        %vm2986 = vcmp.ge.f32.partialorder %v2953, 0.0
        %vm2987 = vcmp.ge.f32.partialorder %v2954, 0.0
        %vm2988 = vcmp.ge.f32.partialorder %v2955, 0.0
        %vm2989 = vcmp.ge.f32.partialorder %v2956, 0.0
        %vm2990 = vcmp.ge.f32.partialorder %v2957, 0.0
        %vm2991 = vcmp.ge.f32.partialorder %v2958, 0.0
        %vm2992 = vcmp.ge.f32.partialorder %v2959, 0.0
        %vm2993 = vcmp.ge.f32.partialorder %v2960, 0.0
        %vm2994 = vcmp.ge.f32.partialorder %v2961, 0.0
        %vm2995 = vcmp.ge.f32.partialorder %v2962, 0.0
        %vm2996 = vcmp.ge.f32.partialorder %v2963, 0.0
        %vm2997 = vcmp.ge.f32.partialorder %v2964, 0.0
        %vm2998 = vcmp.ge.f32.partialorder %v2965, 0.0
        %vm2999 = vcmp.ge.f32.partialorder %v2966, 0.0
        %vm3000 = vcmp.ge.f32.partialorder %v2967, 0.0
        %vm3001 = vcmp.ge.f32.partialorder %v2968, 0.0
        %vm3002 = vcmp.ge.f32.partialorder %v2969, 0.0
        %vm3003 = vcmp.ge.f32.partialorder %v2970, 0.0
        %vm3004 = vcmp.ge.f32.partialorder %v2971, 0.0
        %vm3005 = vcmp.ge.f32.partialorder %v2972, 0.0
        %vm3006 = vcmp.ge.f32.partialorder %v2973, 0.0
        %vm3007 = vcmp.ge.f32.partialorder %v2974, 0.0
        %vm3008 = vcmp.ge.f32.partialorder %v2975, 0.0
        %vm3009 = vcmp.ge.f32.partialorder %v2976, 0.0
        %vm3010 = vcmp.ge.f32.partialorder %v2977, 0.0
        %vm3011 = vcmp.ge.f32.partialorder %v2978, 0.0
        %vm3012 = vcmp.ge.f32.partialorder %v2979, 0.0
        %vm3013 = vcmp.ge.f32.partialorder %v2980, 0.0
        %v3014 = vstv %s2981
        %v3015 = vmul.f32 %v3014, %v2949
        %v3016 = vmul.f32 %v3014, %v2950
        %v3017 = vmul.f32 %v3014, %v2951
        %v3018 = vmul.f32 %v3014, %v2952
        %v3019 = vmul.f32 %v3014, %v2953
        %v3020 = vmul.f32 %v3014, %v2954
        %v3021 = vmul.f32 %v3014, %v2955
        %v3022 = vmul.f32 %v3014, %v2956
        %v3023 = vmul.f32 %v3014, %v2957
        %v3024 = vmul.f32 %v3014, %v2958
        %v3025 = vmul.f32 %v3014, %v2959
        %v3026 = vmul.f32 %v3014, %v2960
        %v3027 = vmul.f32 %v3014, %v2961
        %v3028 = vmul.f32 %v3014, %v2962
        %v3029 = vmul.f32 %v3014, %v2963
        %v3030 = vmul.f32 %v3014, %v2964
        %v3031 = vmul.f32 %v3014, %v2965
        %v3032 = vmul.f32 %v3014, %v2966
        %v3033 = vmul.f32 %v3014, %v2967
        %v3034 = vmul.f32 %v3014, %v2968
        %v3035 = vmul.f32 %v3014, %v2969
        %v3036 = vmul.f32 %v3014, %v2970
        %v3037 = vmul.f32 %v3014, %v2971
        %v3038 = vmul.f32 %v3014, %v2972
        %v3039 = vmul.f32 %v3014, %v2973
        %v3040 = vmul.f32 %v3014, %v2974
        %v3041 = vmul.f32 %v3014, %v2975
        %v3042 = vmul.f32 %v3014, %v2976
        %v3043 = vmul.f32 %v3014, %v2977
        %v3044 = vmul.f32 %v3014, %v2978
        %v3045 = vmul.f32 %v3014, %v2979
        %v3046 = vmul.f32 %v3014, %v2980
        %v3047 = vsel %vm2982, %v2949, %v3015
        %v3048 = vsel %vm2983, %v2950, %v3016
        %v3049 = vsel %vm2984, %v2951, %v3017
        %v3050 = vsel %vm2985, %v2952, %v3018
        %v3051 = vsel %vm2986, %v2953, %v3019
        %v3052 = vsel %vm2987, %v2954, %v3020
        %v3053 = vsel %vm2988, %v2955, %v3021
        %v3054 = vsel %vm2989, %v2956, %v3022
        %v3055 = vsel %vm2990, %v2957, %v3023
        %v3056 = vsel %vm2991, %v2958, %v3024
        %v3057 = vsel %vm2992, %v2959, %v3025
        %v3058 = vsel %vm2993, %v2960, %v3026
        %v3059 = vsel %vm2994, %v2961, %v3027
        %v3060 = vsel %vm2995, %v2962, %v3028
        %v3061 = vsel %vm2996, %v2963, %v3029
        %v3062 = vsel %vm2997, %v2964, %v3030
        %v3063 = vsel %vm2998, %v2965, %v3031
        %v3064 = vsel %vm2999, %v2966, %v3032
        %v3065 = vsel %vm3000, %v2967, %v3033
        %v3066 = vsel %vm3001, %v2968, %v3034
        %v3067 = vsel %vm3002, %v2969, %v3035
        %v3068 = vsel %vm3003, %v2970, %v3036
        %v3069 = vsel %vm3004, %v2971, %v3037
        %v3070 = vsel %vm3005, %v2972, %v3038
        %v3071 = vsel %vm3006, %v2973, %v3039
        %v3072 = vsel %vm3007, %v2974, %v3040
        %v3073 = vsel %vm3008, %v2975, %v3041
        %v3074 = vsel %vm3009, %v2976, %v3042
        %v3075 = vsel %vm3010, %v2977, %v3043
        %v3076 = vsel %vm3011, %v2978, %v3044
        %v3077 = vsel %vm3012, %v2979, %v3045
        %v3078 = vsel %vm3013, %v2980, %v3046
        %3111 = vrot.lane.b32.xlu0 %v3047, 64
        %v3112 = vpop.permute.xlu0 %3111
        %3113 = vrot.lane.b32.xlu0 %v3048, 64
        %v3114 = vpop.permute.xlu0 %3113
        %3115 = vrot.lane.b32.xlu0 %v3049, 64
        %v3116 = vpop.permute.xlu0 %3115
        %3117 = vrot.lane.b32.xlu0 %v3050, 64
        %v3118 = vpop.permute.xlu0 %3117
        %3119 = vrot.lane.b32.xlu0 %v3051, 64
        %v3120 = vpop.permute.xlu0 %3119
        %3121 = vrot.lane.b32.xlu0 %v3052, 64
        %v3122 = vpop.permute.xlu0 %3121
        %3123 = vrot.lane.b32.xlu0 %v3053, 64
        %v3124 = vpop.permute.xlu0 %3123
        %3125 = vrot.lane.b32.xlu0 %v3054, 64
        %v3126 = vpop.permute.xlu0 %3125
        %3127 = vrot.lane.b32.xlu0 %v3055, 64
        %v3128 = vpop.permute.xlu0 %3127
        %3129 = vrot.lane.b32.xlu0 %v3056, 64
        %v3130 = vpop.permute.xlu0 %3129
        %3131 = vrot.lane.b32.xlu0 %v3057, 64
        %v3132 = vpop.permute.xlu0 %3131
        %3133 = vrot.lane.b32.xlu0 %v3058, 64
        %v3134 = vpop.permute.xlu0 %3133
        %3135 = vrot.lane.b32.xlu0 %v3059, 64
        %v3136 = vpop.permute.xlu0 %3135
        %3137 = vrot.lane.b32.xlu0 %v3060, 64
        %v3138 = vpop.permute.xlu0 %3137
        %3139 = vrot.lane.b32.xlu0 %v3061, 64
        %v3140 = vpop.permute.xlu0 %3139
        %3141 = vrot.lane.b32.xlu0 %v3062, 64
        %v3142 = vpop.permute.xlu0 %3141
        %3143 = vrot.lane.b32.xlu0 %v3063, 64
        %v3144 = vpop.permute.xlu0 %3143
        %3145 = vrot.lane.b32.xlu0 %v3064, 64
        %v3146 = vpop.permute.xlu0 %3145
        %3147 = vrot.lane.b32.xlu0 %v3065, 64
        %v3148 = vpop.permute.xlu0 %3147
        %3149 = vrot.lane.b32.xlu0 %v3066, 64
        %v3150 = vpop.permute.xlu0 %3149
        %3151 = vrot.lane.b32.xlu0 %v3067, 64
        %v3152 = vpop.permute.xlu0 %3151
        %3153 = vrot.lane.b32.xlu0 %v3068, 64
        %v3154 = vpop.permute.xlu0 %3153
        %3155 = vrot.lane.b32.xlu0 %v3069, 64
        %v3156 = vpop.permute.xlu0 %3155
        %3157 = vrot.lane.b32.xlu0 %v3070, 64
        %v3158 = vpop.permute.xlu0 %3157
        %3159 = vrot.lane.b32.xlu0 %v3071, 64
        %v3160 = vpop.permute.xlu0 %3159
        %3161 = vrot.lane.b32.xlu0 %v3072, 64
        %v3162 = vpop.permute.xlu0 %3161
        %3163 = vrot.lane.b32.xlu0 %v3073, 64
        %v3164 = vpop.permute.xlu0 %3163
        %3165 = vrot.lane.b32.xlu0 %v3074, 64
        %v3166 = vpop.permute.xlu0 %3165
        %3167 = vrot.lane.b32.xlu0 %v3075, 64
        %v3168 = vpop.permute.xlu0 %3167
        %3169 = vrot.lane.b32.xlu0 %v3076, 64
        %v3170 = vpop.permute.xlu0 %3169
        %3171 = vrot.lane.b32.xlu0 %v3077, 64
        %v3172 = vpop.permute.xlu0 %3171
        %3173 = vrot.lane.b32.xlu0 %v3078, 64
        %v3174 = vpop.permute.xlu0 %3173
        %vm3207 = vcmask 523264
        %v3208 = vsel %vm3207, %v3047, %v3112
        %v3209 = vsel %vm3207, %v3048, %v3114
        %v3210 = vsel %vm3207, %v3049, %v3116
        %v3211 = vsel %vm3207, %v3050, %v3118
        %v3212 = vsel %vm3207, %v3051, %v3120
        %v3213 = vsel %vm3207, %v3052, %v3122
        %v3214 = vsel %vm3207, %v3053, %v3124
        %v3215 = vsel %vm3207, %v3054, %v3126
        %v3216 = vsel %vm3207, %v3055, %v3128
        %v3217 = vsel %vm3207, %v3056, %v3130
        %v3218 = vsel %vm3207, %v3057, %v3132
        %v3219 = vsel %vm3207, %v3058, %v3134
        %v3220 = vsel %vm3207, %v3059, %v3136
        %v3221 = vsel %vm3207, %v3060, %v3138
        %v3222 = vsel %vm3207, %v3061, %v3140
        %v3223 = vsel %vm3207, %v3062, %v3142
        %v3224 = vsel %vm3207, %v3063, %v3144
        %v3225 = vsel %vm3207, %v3064, %v3146
        %v3226 = vsel %vm3207, %v3065, %v3148
        %v3227 = vsel %vm3207, %v3066, %v3150
        %v3228 = vsel %vm3207, %v3067, %v3152
        %v3229 = vsel %vm3207, %v3068, %v3154
        %v3230 = vsel %vm3207, %v3069, %v3156
        %v3231 = vsel %vm3207, %v3070, %v3158
        %v3232 = vsel %vm3207, %v3071, %v3160
        %v3233 = vsel %vm3207, %v3072, %v3162
        %v3234 = vsel %vm3207, %v3073, %v3164
        %v3235 = vsel %vm3207, %v3074, %v3166
        %v3236 = vsel %vm3207, %v3075, %v3168
        %v3237 = vsel %vm3207, %v3076, %v3170
        %v3238 = vsel %vm3207, %v3077, %v3172
        %v3239 = vsel %vm3207, %v3078, %v3174
        %3240 = vst [vmem:[%s215] sm:$0xff] %v3208
        %3241 = vst [vmem:[%s215 + $0x8] sm:$0xff] %v3209
        %3242 = vst [vmem:[%s215 + $0x10] sm:$0xff] %v3208
        %3243 = vst [vmem:[%s215 + $0x18] sm:$0xff] %v3209
        %3244 = vst [vmem:[%s215 + $0x20] sm:$0xff] %v3210
        %3245 = vst [vmem:[%s215 + $0x28] sm:$0xff] %v3211
        %3246 = vst [vmem:[%s215 + $0x30] sm:$0xff] %v3210
        %3247 = vst [vmem:[%s215 + $0x38] sm:$0xff] %v3211
        %3248 = vst [vmem:[%s215 + $0x40] sm:$0xff] %v3212
        %3249 = vst [vmem:[%s215 + $0x48] sm:$0xff] %v3213
        %3250 = vst [vmem:[%s215 + $0x50] sm:$0xff] %v3212
        %3251 = vst [vmem:[%s215 + $0x58] sm:$0xff] %v3213
        %3252 = vst [vmem:[%s215 + $0x60] sm:$0xff] %v3214
        %3253 = vst [vmem:[%s215 + $0x68] sm:$0xff] %v3215
        %3254 = vst [vmem:[%s215 + $0x70] sm:$0xff] %v3214
        %3255 = vst [vmem:[%s215 + $0x78] sm:$0xff] %v3215
        %3256 = vst [vmem:[%s215 + $0x80] sm:$0xff] %v3216
        %3257 = vst [vmem:[%s215 + $0x88] sm:$0xff] %v3217
        %3258 = vst [vmem:[%s215 + $0x90] sm:$0xff] %v3216
        %3259 = vst [vmem:[%s215 + $0x98] sm:$0xff] %v3217
        %3260 = vst [vmem:[%s215 + $0xa0] sm:$0xff] %v3218
        %3261 = vst [vmem:[%s215 + $0xa8] sm:$0xff] %v3219
        %3262 = vst [vmem:[%s215 + $0xb0] sm:$0xff] %v3218
        %3263 = vst [vmem:[%s215 + $0xb8] sm:$0xff] %v3219
        %3264 = vst [vmem:[%s215 + $0xc0] sm:$0xff] %v3220
        %3265 = vst [vmem:[%s215 + $0xc8] sm:$0xff] %v3221
        %3266 = vst [vmem:[%s215 + $0xd0] sm:$0xff] %v3220
        %3267 = vst [vmem:[%s215 + $0xd8] sm:$0xff] %v3221
        %3268 = vst [vmem:[%s215 + $0xe0] sm:$0xff] %v3222
        %3269 = vst [vmem:[%s215 + $0xe8] sm:$0xff] %v3223
        %3270 = vst [vmem:[%s215 + $0xf0] sm:$0xff] %v3222
        %3271 = vst [vmem:[%s215 + $0xf8] sm:$0xff] %v3223
        %3272 = vst [vmem:[%s215 + $0x100] sm:$0xff] %v3224
        %3273 = vst [vmem:[%s215 + $0x108] sm:$0xff] %v3225
        %3274 = vst [vmem:[%s215 + $0x110] sm:$0xff] %v3224
        %3275 = vst [vmem:[%s215 + $0x118] sm:$0xff] %v3225
        %3276 = vst [vmem:[%s215 + $0x120] sm:$0xff] %v3226
        %3277 = vst [vmem:[%s215 + $0x128] sm:$0xff] %v3227
        %3278 = vst [vmem:[%s215 + $0x130] sm:$0xff] %v3226
        %3279 = vst [vmem:[%s215 + $0x138] sm:$0xff] %v3227
        %3280 = vst [vmem:[%s215 + $0x140] sm:$0xff] %v3228
        %3281 = vst [vmem:[%s215 + $0x148] sm:$0xff] %v3229
        %3282 = vst [vmem:[%s215 + $0x150] sm:$0xff] %v3228
        %3283 = vst [vmem:[%s215 + $0x158] sm:$0xff] %v3229
        %3284 = vst [vmem:[%s215 + $0x160] sm:$0xff] %v3230
        %3285 = vst [vmem:[%s215 + $0x168] sm:$0xff] %v3231
        %3286 = vst [vmem:[%s215 + $0x170] sm:$0xff] %v3230
        %3287 = vst [vmem:[%s215 + $0x178] sm:$0xff] %v3231
        %3288 = vst [vmem:[%s215 + $0x180] sm:$0xff] %v3232
        %3289 = vst [vmem:[%s215 + $0x188] sm:$0xff] %v3233
        %3290 = vst [vmem:[%s215 + $0x190] sm:$0xff] %v3232
        %3291 = vst [vmem:[%s215 + $0x198] sm:$0xff] %v3233
        %3292 = vst [vmem:[%s215 + $0x1a0] sm:$0xff] %v3234
        %3293 = vst [vmem:[%s215 + $0x1a8] sm:$0xff] %v3235
        %3294 = vst [vmem:[%s215 + $0x1b0] sm:$0xff] %v3234
        %3295 = vst [vmem:[%s215 + $0x1b8] sm:$0xff] %v3235
        %3296 = vst [vmem:[%s215 + $0x1c0] sm:$0xff] %v3236
        %3297 = vst [vmem:[%s215 + $0x1c8] sm:$0xff] %v3237
        %3298 = vst [vmem:[%s215 + $0x1d0] sm:$0xff] %v3236
        %3299 = vst [vmem:[%s215 + $0x1d8] sm:$0xff] %v3237
        %3300 = vst [vmem:[%s215 + $0x1e0] sm:$0xff] %v3238
        %3301 = vst [vmem:[%s215 + $0x1e8] sm:$0xff] %v3239
        %3302 = vst [vmem:[%s215 + $0x1f0] sm:$0xff] %v3238
        %3303 = vst [vmem:[%s215 + $0x1f8] sm:$0xff] %v3239
        %s3304 = sand.u32 %s132, 1
        %s3305 = scalar_lea.sflag [#allocation4], %s3304
        %s3306 = sand.u32 %s132, 1
        %s3307 = smul.addr %s3306, 512
        %s3308 = scalar_lea.vmem [#allocation3], %s3307
        // Predicated region
        $region37: #{tpu_custom_call.1} parent=35 // pred_check
          %p3309 = pneg %p142
        $region38: #{tpu_custom_call.1} parent=35 // pred_check_branch
          %3311 = sbr.rel (%p3309) target = $region40
        $region39: #{tpu_custom_call.1} parent=35 // pred_region
          %s3312 = smul.u32 16, %s24
          %s3314 = ssub.s32 8192, 8192
          %3315 = vsyncadd %s3305, %s3314
          %s3316 = smul.addr %s3312, 4
          %s3317 = smul.addr %s23, 64
          %s3318 = sadd.s32 %s3316, %s3317
          %s3319 = smul.addr %s3318, 128
          %s3320 = scalar_lea.hbm %s4, %s3319
          %s3321 = sshll.u32 %s3308, 4
          %s3322 = int_to_ptr.vmem [resolvable:$true] %s3321
          %3327 = dma.vmem_to_hbm [thread:$0]  %s3322, 8192, %s3320, %s3305, 128, 128, 8
        $region40: #{tpu_custom_call.1} parent=35 // pred_fallthru
          _
      $region36: #{tpu_custom_call.1} parent=5 // pred_fallthru
        _
      %p3328 = scmp.le.s32.totalorder 2, %s14
      // Predicated region
      $region41: #{tpu_custom_call.1} parent=5 // pred_check
        %p3329 = pneg %p3328
      $region42: #{tpu_custom_call.1} parent=5 // pred_check_branch
        %3331 = sbr.rel (%p3329) target = $region44
      $region43: #{tpu_custom_call.1} parent=5 // pred_region
        %s3332 = ssub.s32 %s14, 2
        // Predicated region
        $region45: #{tpu_custom_call.1} parent=43 // pred_check
          %p3333 = pneg %p148
        $region46: #{tpu_custom_call.1} parent=43 // pred_check_branch
          %3335 = sbr.rel (%p3333) target = $region48
        $region47: #{tpu_custom_call.1} parent=43 // pred_region
          %s3336 = sand.u32 %s133, 1
          %s3337 = scalar_lea.sflag [#allocation4], %s3336
          %s3338 = sand.u32 %s133, 1
          %s3339 = smul.addr %s3338, 512
          %s3340 = scalar_lea.vmem [#allocation3], %s3339
          %3341 = dma.done %s3337, 8192
        $region48: #{tpu_custom_call.1} parent=43 // pred_fallthru
          _
      $region44: #{tpu_custom_call.1} parent=5 // pred_fallthru
        _
    $region6: #{tpu_custom_call.1} parent=1 // loop_footer
      %s18 = sadd.s32 1, %s14
    $region7: #{tpu_custom_call.1} parent=1 // loop_footer_branch
      %13 = sbr.rel target = $region3
    $region8: #{tpu_custom_call.1} parent=1 // loop_exit
      _
    %3342 = vsyncpa [#allocation4], 1
    %s3343 = scalar_lea.sflag [#allocation4], 1
    %3344 = vsyncpa %s3343, 1

</llo_original>
